<compile_context>
chip_gen: v6e
topology: v6e:2x2x1
jax: 0.10.0
libtpu: 0.0.40
codegen_flags: <defaults>
</compile_context>

<pallas_src>
import functools

import jax
import jax.numpy as jnp
import numpy as np
from jax.experimental import pallas as pl
from jax.experimental.pallas import tpu as pltpu


def _round_up(x, m):
    return ((x + m - 1) // m) * m


# ----------------------------- Pallas kernel ---------------------------------
def _conv_bn_relu_kernel(x_ref, w_ref, ss_ref, o_ref, *, kh, kw, wp, tm, num_m):
    """One (group, batch, M-tile) grid step.

    x_ref  : (R_total, cin_g)         bf16  flattened zero-padded image of (n, g)
    w_ref  : (kh*kw*cin_g, cout_pad)  bf16  im2col-ordered conv weight of group g
    ss_ref : (2, cout_pad)            f32   row 0 = BN scale, row 1 = BN shift
    o_ref  : (tm, cout_pad)           bf16  flattened output rows of this tile
    """
    if num_m == 1:
        base = 0                                           # fully static path
    else:
        # num_m > 1 implies tm == tm_max (a power of two multiple of 16).
        base = pl.multiple_of(pl.program_id(2) * tm, tm)

    # Build the (tm, kh*kw*cin_g) patches tile from the kh*kw shifted row windows
    # (bf16, no f32 round trip) and contract it in a SINGLE MXU matmul.
    parts = []
    for i in range(kh):
        for j in range(kw):
            parts.append(x_ref[pl.ds(base + i * wp + j, tm), :])
    patches = jnp.concatenate(parts, axis=-1)              # (tm, kh*kw*cin_g) bf16

    acc = jnp.dot(patches, w_ref[...], preferred_element_type=jnp.float32)

    y = acc * ss_ref[0:1, :] + ss_ref[1:2, :]              # BatchNorm (inference), f32
    o_ref[...] = jnp.maximum(y, 0.0).astype(o_ref.dtype)   # fused ReLU, bf16 store


# ------------------------------ JAX wrapper -----------------------------------
def conv_block_forward(x_nchw, weight, gamma, beta, running_mean, running_var,
                       *, stride=1, padding=0, groups=1, eps=1e-5, tm_max=512):
    """Equivalent of PyTorch _ConvBlock.forward(x) (NCHW in, NCHW out, eval-mode BN)."""
    N, Cin, H, W = x_nchw.shape
    Cout, cin_g, kh, kw = weight.shape
    G = groups
    assert Cin % G == 0 and Cout % G == 0 and cin_g == Cin // G
    cout_g = Cout // G

    Hp, Wp = H + 2 * padding, W + 2 * padding
    Ho = (Hp - kh) // stride + 1
    Wo = (Wp - kw) // stride + 1
    Hc = (Ho - 1) * stride + 1          # row positions the kernel computes over
    M = Hc * Wp                         # flattened rows computed per (n, g)

    tm = min(tm_max, _round_up(M, 16))  # multiple of 16 -> aligned bf16 blocks
    num_m = pl.cdiv(M, tm)
    M_pad = num_m * tm
    cout_pad = _round_up(cout_g, 128)   # lane-dense output stores
    K = kh * kw * cin_g                 # fused contraction size
    halo = (kh - 1) * Wp + (kw - 1)

    # Flattened padded-input rows required by the last tile (tile + halo), rounded
    # up to whole image rows so a single spatial jnp.pad produces them.
    rows_req = M_pad + halo
    extra_h = -(-max(0, rows_req - Hp * Wp) // Wp)
    R_total = (Hp + extra_h) * Wp

    # ---- BatchNorm (inference) scale / shift, applied in f32 in the epilogue -----
    scale = gamma / jnp.sqrt(running_var + eps)             # (Cout,)
    shift = beta - running_mean * scale                     # (Cout,)
    ss = jnp.stack([scale, shift], axis=0).reshape(2, G, cout_g)
    ss = jnp.transpose(ss, (1, 0, 2))                       # (G, 2, cout_g)
    ss = jnp.pad(ss, ((0, 0), (0, 0), (0, cout_pad - cout_g))).astype(jnp.float32)

    # ---- weight -> (G, kh*kw*cin_g, cout_pad) bf16, im2col order = patches order --
    w = weight.reshape(G, cout_g, cin_g, kh, kw)
    w = jnp.transpose(w, (0, 3, 4, 2, 1)).reshape(G, K, cout_g)
    w = jnp.pad(w, ((0, 0), (0, 0), (0, cout_pad - cout_g))).astype(jnp.bfloat16)

    # ---- input: NCHW -> per-group padded NHWC, flattened rows, bf16 --------------
    x = x_nchw.reshape(N, G, cin_g, H, W)
    x = jnp.transpose(x, (0, 1, 3, 4, 2))                   # (N, G, H, W, cin_g)
    x = jnp.pad(x, ((0, 0), (0, 0),
                    (padding, padding + extra_h), (padding, padding), (0, 0)))
    x = x.reshape(N, G, R_total, cin_g).astype(jnp.bfloat16)

    kernel = functools.partial(_conv_bn_relu_kernel,
                               kh=kh, kw=kw, wp=Wp, tm=tm, num_m=num_m)

    # ---- VMEM limit derived from actual block sizes (double-buffered) + temps ----
    lane_pad = lambda c: _round_up(c, 128)
    blk = (_round_up(R_total, 16) * lane_pad(cin_g) * 2      # x block   (bf16)
           + _round_up(K, 16) * cout_pad * 2                 # w block   (bf16)
           + 8 * cout_pad * 4                                # scale/shift (f32)
           + tm * cout_pad * 2)                              # out block (bf16)
    temps = tm * lane_pad(K) * 2 + tm * cout_pad * 4         # patches + f32 acc
    vmem_limit = int(min(112 * 2 ** 20, max(16 * 2 ** 20, 2 * (2 * blk + temps))))

    flops = 2 * N * G * M_pad * K * cout_pad
    bytes_accessed = (x.size * 2 + w.size * 2 + ss.size * 4
                      + N * G * M_pad * cout_pad * 2)

    out = pl.pallas_call(
        kernel,
        out_shape=jax.ShapeDtypeStruct((N, G, M_pad, cout_pad), jnp.bfloat16),
        grid_spec=pltpu.PrefetchScalarGridSpec(
            num_scalar_prefetch=0,
            # g outermost so the weight block is fetched G times, not N*G times.
            grid=(G, N, num_m),
            in_specs=[
                # Whole flattened image of this (n, g): fetched once per (n, g),
                # reused across every M tile (block index does not depend on m).
                pl.BlockSpec((None, None, R_total, cin_g),
                             lambda g, n, m: (n, g, 0, 0)),
                # This group's im2col weight slab.
                pl.BlockSpec((None, K, cout_pad), lambda g, n, m: (g, 0, 0)),
                # Per-channel BatchNorm scale / shift.
                pl.BlockSpec((None, 2, cout_pad), lambda g, n, m: (g, 0, 0)),
            ],
            out_specs=pl.BlockSpec((None, None, tm, cout_pad),
                                   lambda g, n, m: (n, g, m, 0)),
        ),
        compiler_params=pltpu.CompilerParams(
            dimension_semantics=("parallel", "parallel", "parallel"),
            vmem_limit_bytes=vmem_limit),
        cost_estimate=pl.CostEstimate(flops=flops, transcendentals=0,
                                      bytes_accessed=bytes_accessed),
    )(x, w, ss)

    # ---- un-flatten rows -> (Hc, Wp), subsample by stride, crop, back to NCHW ----
    out = out[:, :, :M, :cout_g].reshape(N, G, Hc, Wp, cout_g)
    out = out[:, :, ::stride, ::stride, :][:, :, :Ho, :Wo, :]
    out = jnp.transpose(out, (0, 1, 4, 2, 3)).reshape(N, Cout, Ho, Wo)
    return out.astype(jnp.float32)


# ------------------------------ demo / check ----------------------------------
if __name__ == "__main__":
    # _ConvBlock(in_channels=4, out_channels=8, kernel_size=3, stride=1, padding=1)
    N, Cin, H, W = 2, 4, 16, 16
    Cout, k, stride, padding, groups = 8, 3, 1, 1, 1
    eps = 1e-5

    key = jax.random.PRNGKey(0)
    k1, k2, k3, k4, k5, k6 = jax.random.split(key, 6)
    x = jax.random.normal(k1, (N, Cin, H, W), jnp.float32)
    weight = 0.1 * jax.random.normal(k2, (Cout, Cin // groups, k, k), jnp.float32)
    gamma = 1.0 + 0.1 * jax.random.normal(k3, (Cout,), jnp.float32)
    beta = 0.1 * jax.random.normal(k4, (Cout,), jnp.float32)
    running_mean = 0.1 * jax.random.normal(k5, (Cout,), jnp.float32)
    running_var = jax.random.uniform(k6, (Cout,), jnp.float32, 0.5, 1.5)

    out = conv_block_forward(x, weight, gamma, beta, running_mean, running_var,
                             stride=stride, padding=padding, groups=groups, eps=eps)
    out = jax.block_until_ready(out)

    # Pure-JAX f32 reference (lax conv + BN + ReLU).  The Pallas kernel runs the MXU
    # in bf16 with f32 accumulation and stores bf16, so compare at bf16 tolerances.
    ref_conv = jax.lax.conv_general_dilated(
        x, weight, window_strides=(stride, stride),
        padding=[(padding, padding), (padding, padding)],
        dimension_numbers=("NCHW", "OIHW", "NCHW"),
        feature_group_count=groups)
    scale = gamma / jnp.sqrt(running_var + eps)
    shift = beta - running_mean * scale
    ref = jnp.maximum(ref_conv * scale[None, :, None, None]
                      + shift[None, :, None, None], 0.0)

    np.testing.assert_allclose(np.asarray(out), np.asarray(ref), rtol=2e-2, atol=2e-2)
    print("KERNEL_OK")
</pallas_src>

<mosaic_0001>
module attributes {stable_mosaic.version = 11 : i64} {
  func.func @_conv_bn_relu_kernel(%arg0: i32, %arg1: i32, %arg2: i32, %arg3: memref<1x1x342x4xbf16, #tpu.memory_space<vmem>>, %arg4: memref<1x36x128xbf16, #tpu.memory_space<vmem>>, %arg5: memref<1x2x128xf32, #tpu.memory_space<vmem>>, %arg6: memref<1x1x288x128xbf16, #tpu.memory_space<vmem>>) attributes {dimension_semantics = [#tpu.dimension_semantics<parallel>, #tpu.dimension_semantics<parallel>, #tpu.dimension_semantics<parallel>], iteration_bounds = array<i64: 1, 2, 1>, scalar_prefetch = 0 : i64, scratch_operands = 0 : i64, tpu.core_type = #tpu.core_type<tc>, window_params = [{transform_indices = @transform_0, window_bounds = array<i64: 1, 1, 342, 4>}, {transform_indices = @transform_1, window_bounds = array<i64: 1, 36, 128>}, {transform_indices = @transform_2, window_bounds = array<i64: 1, 2, 128>}, {transform_indices = @transform_3, window_bounds = array<i64: 1, 1, 288, 128>}]} {
    %c0 = arith.constant 0 : index
    %c0_0 = arith.constant 0 : index
    %c0_1 = arith.constant 0 : index
    %c0_2 = arith.constant 0 : index
    %0 = vector.load %arg3[%c0, %c0_0, %c0_1, %c0_2] : memref<1x1x342x4xbf16, #tpu.memory_space<vmem>>, vector<1x1x288x4xbf16>
    %1 = vector.shape_cast %0 : vector<1x1x288x4xbf16> to vector<288x4xbf16>
    %c0_3 = arith.constant 0 : index
    %c0_4 = arith.constant 0 : index
    %c1 = arith.constant 1 : index
    %c0_5 = arith.constant 0 : index
    %2 = vector.load %arg3[%c0_3, %c0_4, %c1, %c0_5] : memref<1x1x342x4xbf16, #tpu.memory_space<vmem>>, vector<1x1x288x4xbf16>
    %3 = vector.shape_cast %2 : vector<1x1x288x4xbf16> to vector<288x4xbf16>
    %c0_6 = arith.constant 0 : index
    %c0_7 = arith.constant 0 : index
    %c2 = arith.constant 2 : index
    %c0_8 = arith.constant 0 : index
    %4 = vector.load %arg3[%c0_6, %c0_7, %c2, %c0_8] : memref<1x1x342x4xbf16, #tpu.memory_space<vmem>>, vector<1x1x288x4xbf16>
    %5 = vector.shape_cast %4 : vector<1x1x288x4xbf16> to vector<288x4xbf16>
    %c0_9 = arith.constant 0 : index
    %c0_10 = arith.constant 0 : index
    %c18 = arith.constant 18 : index
    %c0_11 = arith.constant 0 : index
    %6 = vector.load %arg3[%c0_9, %c0_10, %c18, %c0_11] : memref<1x1x342x4xbf16, #tpu.memory_space<vmem>>, vector<1x1x288x4xbf16>
    %7 = vector.shape_cast %6 : vector<1x1x288x4xbf16> to vector<288x4xbf16>
    %c0_12 = arith.constant 0 : index
    %c0_13 = arith.constant 0 : index
    %c19 = arith.constant 19 : index
    %c0_14 = arith.constant 0 : index
    %8 = vector.load %arg3[%c0_12, %c0_13, %c19, %c0_14] : memref<1x1x342x4xbf16, #tpu.memory_space<vmem>>, vector<1x1x288x4xbf16>
    %9 = vector.shape_cast %8 : vector<1x1x288x4xbf16> to vector<288x4xbf16>
    %c0_15 = arith.constant 0 : index
    %c0_16 = arith.constant 0 : index
    %c20 = arith.constant 20 : index
    %c0_17 = arith.constant 0 : index
    %10 = vector.load %arg3[%c0_15, %c0_16, %c20, %c0_17] : memref<1x1x342x4xbf16, #tpu.memory_space<vmem>>, vector<1x1x288x4xbf16>
    %11 = vector.shape_cast %10 : vector<1x1x288x4xbf16> to vector<288x4xbf16>
    %c0_18 = arith.constant 0 : index
    %c0_19 = arith.constant 0 : index
    %c36 = arith.constant 36 : index
    %c0_20 = arith.constant 0 : index
    %12 = vector.load %arg3[%c0_18, %c0_19, %c36, %c0_20] : memref<1x1x342x4xbf16, #tpu.memory_space<vmem>>, vector<1x1x288x4xbf16>
    %13 = vector.shape_cast %12 : vector<1x1x288x4xbf16> to vector<288x4xbf16>
    %c0_21 = arith.constant 0 : index
    %c0_22 = arith.constant 0 : index
    %c37 = arith.constant 37 : index
    %c0_23 = arith.constant 0 : index
    %14 = vector.load %arg3[%c0_21, %c0_22, %c37, %c0_23] : memref<1x1x342x4xbf16, #tpu.memory_space<vmem>>, vector<1x1x288x4xbf16>
    %15 = vector.shape_cast %14 : vector<1x1x288x4xbf16> to vector<288x4xbf16>
    %c0_24 = arith.constant 0 : index
    %c0_25 = arith.constant 0 : index
    %c38 = arith.constant 38 : index
    %c0_26 = arith.constant 0 : index
    %16 = vector.load %arg3[%c0_24, %c0_25, %c38, %c0_26] : memref<1x1x342x4xbf16, #tpu.memory_space<vmem>>, vector<1x1x288x4xbf16>
    %17 = vector.shape_cast %16 : vector<1x1x288x4xbf16> to vector<288x4xbf16>
    %18 = tpu.concatenate %1, %3, %5, %7, %9, %11, %13, %15, %17 in 1 : vector<288x4xbf16>, vector<288x4xbf16>, vector<288x4xbf16>, vector<288x4xbf16>, vector<288x4xbf16>, vector<288x4xbf16>, vector<288x4xbf16>, vector<288x4xbf16>, vector<288x4xbf16> -> vector<288x36xbf16>
    %c0_27 = arith.constant 0 : index
    %c0_28 = arith.constant 0 : index
    %c0_29 = arith.constant 0 : index
    %19 = vector.load %arg4[%c0_27, %c0_28, %c0_29] : memref<1x36x128xbf16, #tpu.memory_space<vmem>>, vector<1x36x128xbf16>
    %20 = vector.shape_cast %19 : vector<1x36x128xbf16> to vector<36x128xbf16>
    %cst = arith.constant dense<0.000000e+00> : vector<288x128xf32>
    %21 = tpu.matmul %18, %20, %cst {dimension_numbers = #tpu.dot_dimension_numbers<[1], [0], [0], [1], [0, 0, 1, 1], [], []>} : vector<288x36xbf16>, vector<36x128xbf16>, vector<288x128xf32> -> vector<288x128xf32>
    %c0_30 = arith.constant 0 : index
    %c0_31 = arith.constant 0 : index
    %c0_32 = arith.constant 0 : index
    %22 = vector.load %arg5[%c0_30, %c0_31, %c0_32] : memref<1x2x128xf32, #tpu.memory_space<vmem>>, vector<1x1x128xf32>
    %23 = vector.shape_cast %22 : vector<1x1x128xf32> to vector<1x128xf32>
    %24 = vector.broadcast %23 : vector<1x128xf32> to vector<288x128xf32>
    %25 = arith.mulf %21, %24 : vector<288x128xf32>
    %c0_33 = arith.constant 0 : index
    %c1_34 = arith.constant 1 : index
    %c0_35 = arith.constant 0 : index
    %26 = vector.load %arg5[%c0_33, %c1_34, %c0_35] : memref<1x2x128xf32, #tpu.memory_space<vmem>>, vector<1x1x128xf32>
    %27 = vector.shape_cast %26 : vector<1x1x128xf32> to vector<1x128xf32>
    %28 = vector.broadcast %27 : vector<1x128xf32> to vector<288x128xf32>
    %29 = arith.addf %25, %28 : vector<288x128xf32>
    %cst_36 = arith.constant 0.000000e+00 : f32
    %30 = vector.broadcast %cst_36 : f32 to vector<288x128xf32>
    %31 = arith.maximumf %29, %30 : vector<288x128xf32>
    %32 = arith.truncf %31 : vector<288x128xf32> to vector<288x128xbf16>
    %c0_37 = arith.constant 0 : index
    %c0_38 = arith.constant 0 : index
    %c0_39 = arith.constant 0 : index
    %c0_40 = arith.constant 0 : index
    %33 = vector.load %arg6[%c0_37, %c0_38, %c0_39, %c0_40] : memref<1x1x288x128xbf16, #tpu.memory_space<vmem>>, vector<1x1x288x128xbf16>
    %34 = vector.shape_cast %33 : vector<1x1x288x128xbf16> to vector<288x128xbf16>
    %35 = vector.shape_cast %32 : vector<288x128xbf16> to vector<1x1x288x128xbf16>
    tpu.vector_store %arg6[%c0_37, %c0_38, %c0_39, %c0_40], %35 {strides = array<i32>} : memref<1x1x288x128xbf16, #tpu.memory_space<vmem>>, vector<1x1x288x128xbf16>,
    return
  }
  func.func @transform_0(%arg0: i32, %arg1: i32, %arg2: i32) -> (i32, i32, i32, i32) {
    %c0_i32 = arith.constant 0 : i32
    %c0_i32_0 = arith.constant 0 : i32
    %c0_i32_1 = arith.constant 0 : i32
    return %arg1, %arg0, %c0_i32, %c0_i32_0 : i32, i32, i32, i32
  }
  func.func @transform_1(%arg0: i32, %arg1: i32, %arg2: i32) -> (i32, i32, i32) {
    %c0_i32 = arith.constant 0 : i32
    %c0_i32_0 = arith.constant 0 : i32
    %c0_i32_1 = arith.constant 0 : i32
    return %arg0, %c0_i32, %c0_i32_0 : i32, i32, i32
  }
  func.func @transform_2(%arg0: i32, %arg1: i32, %arg2: i32) -> (i32, i32, i32) {
    %c0_i32 = arith.constant 0 : i32
    %c0_i32_0 = arith.constant 0 : i32
    %c0_i32_1 = arith.constant 0 : i32
    return %arg0, %c0_i32, %c0_i32_0 : i32, i32, i32
  }
  func.func @transform_3(%arg0: i32, %arg1: i32, %arg2: i32) -> (i32, i32, i32, i32) {
    %c0_i32 = arith.constant 0 : i32
    %c0_i32_0 = arith.constant 0 : i32
    return %arg1, %arg0, %arg2, %c0_i32 : i32, i32, i32, i32
  }
}

</mosaic_0001>

<llo_original>
// kernel: tpu_custom_call.1
$region0: #{tpu_custom_call.1}
  #allocation0 [shape = 'u32[]', space=smem, size = 0x4, offset = 0x4, fixed_abs, tag = 'smem constant byte address 0x4 - core index']
  #allocation1 [shape = 'u32[144,128]{1,0:T(1,128)}', space=vmem, size = 0x12000, scoped, tag = 'internal scratch']
  %s0 = inlined_call_operand.vmem [shape: bf16[2,1,342,4], index: 0, kind: input, shape index: {}]
  %s1 = inlined_call_operand.vmem [shape: bf16[1,36,128], index: 1, kind: input, shape index: {}]
  %s2 = inlined_call_operand.vmem [shape: f32[1,2,128], index: 2, kind: input, shape index: {}]
  %s3 = inlined_call_operand.hbm [shape: bf16[2,1,288,128], index: 3, kind: output, shape index: {}]
  %s4 = sld [smem:[#allocation0]]
  $region45: #{tpu_custom_call.1} parent=0
    _
  %s6 = ssub.s32 1, %s4
  %s7 = scalar_select 0, %s6, %s4
  $region1: #{tpu_custom_call.1} parent=0
    #allocation2 [shape = 'u8[147456]{0}', space=vmem, size = 0x24000, scoped, tag = 'output window, operand 0']
    #allocation3 [shape = 's32[2]{0}', space=sflag, size = 0x8, scoped, tag = 'scoped memory for tpu_custom_call.1']
    %8 = vsyncpa [#allocation3], 0
    %s9 = scalar_lea.sflag [#allocation3], 1
    %10 = vsyncpa %s9, 0
    loop: start=0, step=1, limit=4
    $region2: #{tpu_custom_call.1} parent=1 // loop_pre_header
      _
    $region3: #{tpu_custom_call.1} parent=1 // loop_header
      %s12 = sphi 0, %s16
      %p13 = scmp.ge.s32.totalorder %s12, 4
      %s19 = sphi 0, %s38
      %s20 = sphi 0, %s34
      %s21 = sphi 0, %s30
      %s22 = sphi 0, %s19
      %s23 = sphi 0, %s20
      %s24 = sphi 0, %s21
      %s25 = sphi 0, %s22
      %s26 = sphi 0, %s23
      %s27 = sphi 0, %s24
      %s43 = sphi 0, %s45
      %s46 = sphi 0, %s43
      %s47 = sphi 0, %s46
      %s63 = sphi 0, %s47
      %s69 = sphi 0, %s71
      %s72 = sphi 0, %s69
      %s73 = sphi 0, %s72
      %s89 = sphi 0, %s73
      %s95 = sphi 0, %s97
      %s98 = sphi 0, %s95
      %s99 = sphi 0, %s98
      %s115 = sphi 0, %s99
      %s125 = sphi 0, %s127
      %s128 = sphi 0, %s125
      %s129 = sphi 0, %s128
      %s145 = sphi 0, %s129
    $region4: #{tpu_custom_call.1} parent=1 // loop_header_branch
      %15 = sbr.rel (%p13) target = $region8
    $region5: #{tpu_custom_call.1} parent=1 // loop_body
      %s17 = ssub.s32 %s12, 1
      %s18 = ssub.s32 %s12, 2
      %s28 = sadd.s32 1, %s21
      %p29 = scmp.ge.s32.totalorder %s28, 1
      %s30 = scalar_select %p29, 0, %s28
      %s31 = sadd.s32 1, %s20
      %s32 = scalar_select %p29, %s31, %s20
      %p33 = scmp.ge.s32.totalorder %s32, 2
      %s34 = scalar_select %p33, 0, %s32
      %s35 = sadd.s32 1, %s19
      %s36 = scalar_select %p33, %s35, %s19
      %p37 = scmp.ge.s32.totalorder %s36, 1
      %s38 = scalar_select %p37, 0, %s36
      %s39 = ssub.s32 %s20, %s34
      %s40 = ssub.s32 %s19, %s38
      %s41 = sor.u32 %s39, %s40
      %p42 = scmp.eq.s32.totalorder %s41, 0
      %s44 = sadd.s32 %s43, 1
      %s45 = scalar_select %p42, %s43, %s44
      %p48 = pneg %p42
      %p49 = scmp.eq.s32.totalorder %s12, 1
      %p50 = por %p48, %p49
      %p51 = scmp.ne.s32.totalorder %s43, %s46
      %p52 = scmp.eq.s32.totalorder %s12, 0
      %p53 = por %p51, %p52
      %p54 = scmp.ne.s32.totalorder %s43, %s46
      %p55 = scmp.eq.s32.totalorder %s17, 1
      %p56 = por %p54, %p55
      %p57 = scmp.ne.s32.totalorder %s46, %s47
      %p58 = scmp.eq.s32.totalorder %s17, 0
      %p59 = por %p57, %p58
      %p60 = scmp.ne.s32.totalorder %s46, %s47
      %p61 = scmp.eq.s32.totalorder %s18, 1
      %p62 = por %p60, %p61
      %p64 = scmp.ne.s32.totalorder %s47, %s63
      %p65 = scmp.eq.s32.totalorder %s18, 0
      %p66 = por %p64, %p65
      %s67 = ssub.s32 %s19, %s38
      %p68 = scmp.eq.s32.totalorder %s67, 0
      %s70 = sadd.s32 %s69, 1
      %s71 = scalar_select %p68, %s69, %s70
      %p74 = pneg %p68
      %p75 = scmp.eq.s32.totalorder %s12, 1
      %p76 = por %p74, %p75
      %p77 = scmp.ne.s32.totalorder %s69, %s72
      %p78 = scmp.eq.s32.totalorder %s12, 0
      %p79 = por %p77, %p78
      %p80 = scmp.ne.s32.totalorder %s69, %s72
      %p81 = scmp.eq.s32.totalorder %s17, 1
      %p82 = por %p80, %p81
      %p83 = scmp.ne.s32.totalorder %s72, %s73
      %p84 = scmp.eq.s32.totalorder %s17, 0
      %p85 = por %p83, %p84
      %p86 = scmp.ne.s32.totalorder %s72, %s73
      %p87 = scmp.eq.s32.totalorder %s18, 1
      %p88 = por %p86, %p87
      %p90 = scmp.ne.s32.totalorder %s73, %s89
      %p91 = scmp.eq.s32.totalorder %s18, 0
      %p92 = por %p90, %p91
      %s93 = ssub.s32 %s19, %s38
      %p94 = scmp.eq.s32.totalorder %s93, 0
      %s96 = sadd.s32 %s95, 1
      %s97 = scalar_select %p94, %s95, %s96
      %p100 = pneg %p94
      %p101 = scmp.eq.s32.totalorder %s12, 1
      %p102 = por %p100, %p101
      %p103 = scmp.ne.s32.totalorder %s95, %s98
      %p104 = scmp.eq.s32.totalorder %s12, 0
      %p105 = por %p103, %p104
      %p106 = scmp.ne.s32.totalorder %s95, %s98
      %p107 = scmp.eq.s32.totalorder %s17, 1
      %p108 = por %p106, %p107
      %p109 = scmp.ne.s32.totalorder %s98, %s99
      %p110 = scmp.eq.s32.totalorder %s17, 0
      %p111 = por %p109, %p110
      %p112 = scmp.ne.s32.totalorder %s98, %s99
      %p113 = scmp.eq.s32.totalorder %s18, 1
      %p114 = por %p112, %p113
      %p116 = scmp.ne.s32.totalorder %s99, %s115
      %p117 = scmp.eq.s32.totalorder %s18, 0
      %p118 = por %p116, %p117
      %s119 = ssub.s32 %s20, %s34
      %s120 = ssub.s32 %s19, %s38
      %s121 = sor.u32 %s119, %s120
      %s122 = ssub.s32 %s21, %s30
      %s123 = sor.u32 %s121, %s122
      %p124 = scmp.eq.s32.totalorder %s123, 0
      %s126 = sadd.s32 %s125, 1
      %s127 = scalar_select %p124, %s125, %s126
      %p130 = pneg %p124
      %p131 = scmp.eq.s32.totalorder %s12, 1
      %p132 = por %p130, %p131
      %p133 = scmp.ne.s32.totalorder %s125, %s128
      %p134 = scmp.eq.s32.totalorder %s12, 0
      %p135 = por %p133, %p134
      %p136 = scmp.ne.s32.totalorder %s125, %s128
      %p137 = scmp.eq.s32.totalorder %s17, 1
      %p138 = por %p136, %p137
      %p139 = scmp.ne.s32.totalorder %s128, %s129
      %p140 = scmp.eq.s32.totalorder %s17, 0
      %p141 = por %p139, %p140
      %p142 = scmp.ne.s32.totalorder %s128, %s129
      %p143 = scmp.eq.s32.totalorder %s18, 1
      %p144 = por %p142, %p143
      %p146 = scmp.ne.s32.totalorder %s129, %s145
      %p147 = scmp.eq.s32.totalorder %s18, 0
      %p148 = por %p146, %p147
      %p149 = scmp.le.s32.totalorder 1, %s12
      %p150 = scmp.lt.s32.totalorder %s12, 3
      %p151 = pnand %p149, %p150
      %p152 = pneg %p151
      // Predicated region
      $region9: #{tpu_custom_call.1} parent=5 // pred_check
        _
      $region10: #{tpu_custom_call.1} parent=5 // pred_check_branch
        %154 = sbr.rel (%p151) target = $region12
      $region11: #{tpu_custom_call.1} parent=5 // pred_region
        %s155 = ssub.s32 %s12, 1
        // Predicated region
        $region13: #{tpu_custom_call.1} parent=11 // pred_check
          %p156 = pneg %p85
        $region14: #{tpu_custom_call.1} parent=11 // pred_check_branch
          %158 = sbr.rel (%p156) target = $region16
        $region15: #{tpu_custom_call.1} parent=11 // pred_region
          %p159 = scmp.lt.s32.totalorder %s22, 0
          %s160 = scalar_select %p159, %s22, 0
          %s161 = smul.addr %s160, 5
          %s162 = smul.addr %s161, 4
          %s163 = scalar_lea.vmem %s1, %s162
        $region16: #{tpu_custom_call.1} parent=11 // pred_fallthru
          _
        // Predicated region
        $region17: #{tpu_custom_call.1} parent=11 // pred_check
          %p164 = pneg %p111
        $region18: #{tpu_custom_call.1} parent=11 // pred_check_branch
          %166 = sbr.rel (%p164) target = $region20
        $region19: #{tpu_custom_call.1} parent=11 // pred_region
          %p167 = scmp.lt.s32.totalorder %s22, 0
          %s168 = scalar_select %p167, %s22, 0
          %s169 = smul.addr %s168, 2
          %s170 = scalar_lea.vmem %s2, %s169
        $region20: #{tpu_custom_call.1} parent=11 // pred_fallthru
          _
      $region12: #{tpu_custom_call.1} parent=5 // pred_fallthru
        _
      %p171 = scmp.lt.s32.totalorder %s12, 2
      // Predicated region
      $region21: #{tpu_custom_call.1} parent=5 // pred_check
        %p172 = pneg %p171
      $region22: #{tpu_custom_call.1} parent=5 // pred_check_branch
        %174 = sbr.rel (%p172) target = $region24
      $region23: #{tpu_custom_call.1} parent=5 // pred_region
        // Predicated region
        $region25: #{tpu_custom_call.1} parent=23 // pred_check
          %p175 = pneg %p53
        $region26: #{tpu_custom_call.1} parent=23 // pred_check_branch
          %177 = sbr.rel (%p175) target = $region28
        $region27: #{tpu_custom_call.1} parent=23 // pred_region
          %p178 = scmp.lt.s32.totalorder %s20, 1
          %s179 = scalar_select %p178, %s20, 1
          %p180 = scmp.lt.s32.totalorder %s19, 0
          %s181 = scalar_select %p180, %s19, 0
          %s182 = smul.addr %s181, 43
          %s183 = smul.addr %s179, 43
          %s184 = sadd.s32 %s182, %s183
          %s185 = smul.addr %s184, 4
          %s186 = scalar_lea.vmem %s0, %s185
        $region28: #{tpu_custom_call.1} parent=23 // pred_fallthru
          _
      $region24: #{tpu_custom_call.1} parent=5 // pred_fallthru
        _
      %p187 = scmp.le.s32.totalorder 1, %s12
      %p188 = scmp.lt.s32.totalorder %s12, 3
      %p189 = pnand %p187, %p188
      %p190 = pneg %p189
      // Predicated region
      $region29: #{tpu_custom_call.1} parent=5 // pred_check
        _
      $region30: #{tpu_custom_call.1} parent=5 // pred_check_branch
        %192 = sbr.rel (%p189) target = $region32
      $region31: #{tpu_custom_call.1} parent=5 // pred_region
        %s193 = ssub.s32 %s12, 1
        %p194 = scmp.lt.s32.totalorder %s23, 1
        %s195 = scalar_select %p194, %s23, 1
        %p196 = scmp.lt.s32.totalorder %s22, 0
        %s197 = scalar_select %p196, %s22, 0
        %s198 = smul.addr %s197, 43
        %s199 = smul.addr %s195, 43
        %s200 = sadd.s32 %s198, %s199
        %s201 = smul.addr %s200, 4
        %s202 = scalar_lea.vmem %s0, %s201
        %p203 = pneg %p59
        %p204 = pneg %p56
        %p205 = scmp.lt.s32.totalorder %s22, 0
        %s206 = scalar_select %p205, %s22, 0
        %s207 = smul.addr %s206, 5
        %s208 = smul.addr %s207, 4
        %s209 = scalar_lea.vmem %s1, %s208
        %p210 = pneg %p85
        %p211 = pneg %p82
        %p212 = scmp.lt.s32.totalorder %s22, 0
        %s213 = scalar_select %p212, %s22, 0
        %s214 = smul.addr %s213, 2
        %s215 = scalar_lea.vmem %s2, %s214
        %p216 = pneg %p111
        %p217 = pneg %p108
        %p218 = pneg %p141
        %p219 = pneg %p138
        %s220 = sand.u32 %s128, 1
        %s221 = scalar_lea.sflag [#allocation3], %s220
        %s222 = sand.u32 %s128, 1
        %s223 = smul.addr %s222, 144
        %s224 = scalar_lea.vmem [#allocation2], %s223
        %p225 = scmp.lt.s32.totalorder %s23, 1
        %s226 = scalar_select %p225, %s23, 1
        %p227 = scmp.lt.s32.totalorder %s22, 0
        %s228 = scalar_select %p227, %s22, 0
        %s229 = smul.addr %s228, 43
        %s230 = smul.addr %s226, 43
        %s231 = sadd.s32 %s229, %s230
        %s232 = smul.addr %s231, 4
        %s233 = scalar_lea.vmem %s0, %s232
        %p234 = scmp.lt.s32.totalorder %s22, 0
        %s235 = scalar_select %p234, %s22, 0
        %s236 = smul.addr %s235, 5
        %s237 = smul.addr %s236, 4
        %s238 = scalar_lea.vmem %s1, %s237
        %p239 = scmp.lt.s32.totalorder %s22, 0
        %s240 = scalar_select %p239, %s22, 0
        %s241 = smul.addr %s240, 2
        %s242 = scalar_lea.vmem %s2, %s241
        %s243 = smul.u32 36, %s24
        %v245 = vld [vmem:[%s233] sm:$0xf]
        %v246 = vld [vmem:[%s233 + $0x4] sm:$0xf]
        %v247 = vld [vmem:[%s233 + $0x8] sm:$0xf]
        %v248 = vld [vmem:[%s233 + $0xc] sm:$0xf]
        %v249 = vld [vmem:[%s233 + $0x10] sm:$0xf]
        %v250 = vld [vmem:[%s233 + $0x14] sm:$0xf]
        %v251 = vld [vmem:[%s233 + $0x18] sm:$0xf]
        %v252 = vld [vmem:[%s233 + $0x1c] sm:$0xf]
        %v253 = vld [vmem:[%s233 + $0x20] sm:$0xf]
        %v254 = vld [vmem:[%s233 + $0x24] sm:$0xf]
        %v255 = vld [vmem:[%s233 + $0x28] sm:$0xf]
        %v256 = vld [vmem:[%s233 + $0x2c] sm:$0xf]
        %v257 = vld [vmem:[%s233 + $0x30] sm:$0xf]
        %v258 = vld [vmem:[%s233 + $0x34] sm:$0xf]
        %v259 = vld [vmem:[%s233 + $0x38] sm:$0xf]
        %v260 = vld [vmem:[%s233 + $0x3c] sm:$0xf]
        %v261 = vld [vmem:[%s233 + $0x40] sm:$0xf]
        %v262 = vld [vmem:[%s233 + $0x44] sm:$0xf]
        %v263 = vld [vmem:[%s233 + $0x48] sm:$0xf]
        %v264 = vld [vmem:[%s233 + $0x4c] sm:$0xf]
        %v265 = vld [vmem:[%s233 + $0x50] sm:$0xf]
        %v266 = vld [vmem:[%s233 + $0x54] sm:$0xf]
        %v267 = vld [vmem:[%s233 + $0x58] sm:$0xf]
        %v268 = vld [vmem:[%s233 + $0x5c] sm:$0xf]
        %v269 = vld [vmem:[%s233 + $0x60] sm:$0xf]
        %v270 = vld [vmem:[%s233 + $0x64] sm:$0xf]
        %v271 = vld [vmem:[%s233 + $0x68] sm:$0xf]
        %v272 = vld [vmem:[%s233 + $0x6c] sm:$0xf]
        %v273 = vld [vmem:[%s233 + $0x70] sm:$0xf]
        %v274 = vld [vmem:[%s233 + $0x74] sm:$0xf]
        %v275 = vld [vmem:[%s233 + $0x78] sm:$0xf]
        %v276 = vld [vmem:[%s233 + $0x7c] sm:$0xf]
        %v277 = vld [vmem:[%s233 + $0x80] sm:$0xf]
        %v278 = vld [vmem:[%s233 + $0x84] sm:$0xf]
        %v279 = vld [vmem:[%s233 + $0x88] sm:$0xf]
        %v280 = vld [vmem:[%s233 + $0x8c] sm:$0xf]
        %v281 = vld [vmem:[%s233 + $0x90] sm:$0x1]
        %v282 = vld [vmem:[%s233] sm:$0xe]
        %v283 = vld [vmem:[%s233 + $0x8] sm:$0xe]
        %v284 = vld [vmem:[%s233 + $0x90] sm:$0xf]
        %v285 = vld [vmem:[%s233 + $0x94] sm:$0xf]
        %v286 = vld [vmem:[%s233 + $0x98] sm:$0x1]
        %v287 = vld [vmem:[%s233 + $0x98] sm:$0x3]
        %v288 = vld [vmem:[%s233 + $0x8] sm:$0xc]
        %v289 = vld [vmem:[%s233 + $0x10] sm:$0xc]
        %v290 = vld [vmem:[%s233 + $0x98] sm:$0xf]
        %v291 = vld [vmem:[%s233 + $0x9c] sm:$0xf]
        %v292 = vld [vmem:[%s233 + $0xa0] sm:$0x3]
        %v293 = vld [vmem:[%s233 + $0xa0] sm:$0x7]
        %v294 = vld [vmem:[%s233 + $0x10] sm:$0x8]
        %v331 = vunpack.c.l.b16 %v245
        %v332 = vunpack.c.l.b16 %v246
        %v333 = vunpack.c.l.b16 %v247
        %v334 = vunpack.c.l.b16 %v248
        %v335 = vunpack.c.l.b16 %v249
        %v336 = vunpack.c.l.b16 %v250
        %v337 = vunpack.c.l.b16 %v251
        %v338 = vunpack.c.l.b16 %v252
        %v339 = vunpack.c.l.b16 %v253
        %v340 = vunpack.c.l.b16 %v254
        %v341 = vunpack.c.l.b16 %v255
        %v342 = vunpack.c.l.b16 %v256
        %v343 = vunpack.c.l.b16 %v257
        %v344 = vunpack.c.l.b16 %v258
        %v345 = vunpack.c.l.b16 %v259
        %v346 = vunpack.c.l.b16 %v260
        %v347 = vunpack.c.l.b16 %v261
        %v348 = vunpack.c.l.b16 %v262
        %v349 = vunpack.c.l.b16 %v263
        %v350 = vunpack.c.l.b16 %v264
        %v351 = vunpack.c.l.b16 %v265
        %v352 = vunpack.c.l.b16 %v266
        %v353 = vunpack.c.l.b16 %v267
        %v354 = vunpack.c.l.b16 %v268
        %v355 = vunpack.c.l.b16 %v269
        %v356 = vunpack.c.l.b16 %v270
        %v357 = vunpack.c.l.b16 %v271
        %v358 = vunpack.c.l.b16 %v272
        %v359 = vunpack.c.l.b16 %v273
        %v360 = vunpack.c.l.b16 %v274
        %v361 = vunpack.c.l.b16 %v275
        %v362 = vunpack.c.l.b16 %v276
        %v363 = vunpack.c.l.b16 %v277
        %v364 = vunpack.c.l.b16 %v278
        %v365 = vunpack.c.l.b16 %v279
        %v366 = vunpack.c.l.b16 %v280
        %v367 = vpack.c.b16 %v332, %v331
        %v368 = vpack.c.b16 %v334, %v333
        %v369 = vpack.c.b16 %v336, %v335
        %v370 = vpack.c.b16 %v338, %v337
        %v371 = vpack.c.b16 %v340, %v339
        %v372 = vpack.c.b16 %v342, %v341
        %v373 = vpack.c.b16 %v344, %v343
        %v374 = vpack.c.b16 %v346, %v345
        %v375 = vpack.c.b16 %v348, %v347
        %v376 = vpack.c.b16 %v350, %v349
        %v377 = vpack.c.b16 %v352, %v351
        %v378 = vpack.c.b16 %v354, %v353
        %v379 = vpack.c.b16 %v356, %v355
        %v380 = vpack.c.b16 %v358, %v357
        %v381 = vpack.c.b16 %v360, %v359
        %v382 = vpack.c.b16 %v362, %v361
        %v383 = vpack.c.b16 %v364, %v363
        %v384 = vpack.c.b16 %v366, %v365
        %v386 = vunpack.c.l.b16 %v281
        %v387 = vpack.c.b16 %v386, %v386
        %vm388 = vsmask.f32 7424
        %v390 = vshrl.u32 %v367, 16
        %v392 = vshll.u32 %v367, 16
        %v394 = vrot.slane %v392, 1
        %v395 = vor.u32 %v390, %v394
        %v397 = vshll.u32 %v368, 16
        %v399 = vrot.slane %v397, 1
        %v400 = vsel %vm388, %v395, %v399
        %v401 = vshrl.u32 %v368, 16
        %v403 = vor.u32 %v401, %v399
        %v405 = vshll.u32 %v369, 16
        %v407 = vrot.slane %v405, 1
        %v408 = vsel %vm388, %v403, %v407
        %v409 = vshrl.u32 %v369, 16
        %v411 = vor.u32 %v409, %v407
        %v413 = vshll.u32 %v370, 16
        %v415 = vrot.slane %v413, 1
        %v416 = vsel %vm388, %v411, %v415
        %v417 = vshrl.u32 %v370, 16
        %v419 = vor.u32 %v417, %v415
        %v421 = vshll.u32 %v371, 16
        %v423 = vrot.slane %v421, 1
        %v424 = vsel %vm388, %v419, %v423
        %v425 = vshrl.u32 %v371, 16
        %v427 = vor.u32 %v425, %v423
        %v429 = vshll.u32 %v372, 16
        %v431 = vrot.slane %v429, 1
        %v432 = vsel %vm388, %v427, %v431
        %v433 = vshrl.u32 %v372, 16
        %v435 = vor.u32 %v433, %v431
        %v437 = vshll.u32 %v373, 16
        %v439 = vrot.slane %v437, 1
        %v440 = vsel %vm388, %v435, %v439
        %v441 = vshrl.u32 %v373, 16
        %v443 = vor.u32 %v441, %v439
        %v445 = vshll.u32 %v374, 16
        %v447 = vrot.slane %v445, 1
        %v448 = vsel %vm388, %v443, %v447
        %v449 = vshrl.u32 %v374, 16
        %v451 = vor.u32 %v449, %v447
        %v453 = vshll.u32 %v375, 16
        %v455 = vrot.slane %v453, 1
        %v456 = vsel %vm388, %v451, %v455
        %v457 = vshrl.u32 %v375, 16
        %v459 = vor.u32 %v457, %v455
        %v461 = vshll.u32 %v376, 16
        %v463 = vrot.slane %v461, 1
        %v464 = vsel %vm388, %v459, %v463
        %v465 = vshrl.u32 %v376, 16
        %v467 = vor.u32 %v465, %v463
        %v469 = vshll.u32 %v377, 16
        %v471 = vrot.slane %v469, 1
        %v472 = vsel %vm388, %v467, %v471
        %v473 = vshrl.u32 %v377, 16
        %v475 = vor.u32 %v473, %v471
        %v477 = vshll.u32 %v378, 16
        %v479 = vrot.slane %v477, 1
        %v480 = vsel %vm388, %v475, %v479
        %v481 = vshrl.u32 %v378, 16
        %v483 = vor.u32 %v481, %v479
        %v485 = vshll.u32 %v379, 16
        %v487 = vrot.slane %v485, 1
        %v488 = vsel %vm388, %v483, %v487
        %v489 = vshrl.u32 %v379, 16
        %v491 = vor.u32 %v489, %v487
        %v493 = vshll.u32 %v380, 16
        %v495 = vrot.slane %v493, 1
        %v496 = vsel %vm388, %v491, %v495
        %v497 = vshrl.u32 %v380, 16
        %v499 = vor.u32 %v497, %v495
        %v501 = vshll.u32 %v381, 16
        %v503 = vrot.slane %v501, 1
        %v504 = vsel %vm388, %v499, %v503
        %v505 = vshrl.u32 %v381, 16
        %v507 = vor.u32 %v505, %v503
        %v509 = vshll.u32 %v382, 16
        %v511 = vrot.slane %v509, 1
        %v512 = vsel %vm388, %v507, %v511
        %v513 = vshrl.u32 %v382, 16
        %v515 = vor.u32 %v513, %v511
        %v517 = vshll.u32 %v383, 16
        %v519 = vrot.slane %v517, 1
        %v520 = vsel %vm388, %v515, %v519
        %v521 = vshrl.u32 %v383, 16
        %v523 = vor.u32 %v521, %v519
        %v525 = vshll.u32 %v384, 16
        %v527 = vrot.slane %v525, 1
        %v528 = vsel %vm388, %v523, %v527
        %v529 = vshrl.u32 %v384, 16
        %v531 = vor.u32 %v529, %v527
        %v533 = vshll.u32 %v387, 16
        %v535 = vrot.slane %v533, 1
        %v536 = vsel %vm388, %v531, %v535
        %537 = vrot.lane.b32.xlu0 %v400, 4
        %v538 = vpop.permute.xlu0 %537
        %539 = vrot.lane.b32.xlu0 %v408, 4
        %v540 = vpop.permute.xlu0 %539
        %541 = vrot.lane.b32.xlu0 %v416, 4
        %v542 = vpop.permute.xlu0 %541
        %543 = vrot.lane.b32.xlu0 %v424, 4
        %v544 = vpop.permute.xlu0 %543
        %545 = vrot.lane.b32.xlu0 %v432, 4
        %v546 = vpop.permute.xlu0 %545
        %547 = vrot.lane.b32.xlu0 %v440, 4
        %v548 = vpop.permute.xlu0 %547
        %549 = vrot.lane.b32.xlu0 %v448, 4
        %v550 = vpop.permute.xlu0 %549
        %551 = vrot.lane.b32.xlu0 %v456, 4
        %v552 = vpop.permute.xlu0 %551
        %553 = vrot.lane.b32.xlu0 %v464, 4
        %v554 = vpop.permute.xlu0 %553
        %555 = vrot.lane.b32.xlu0 %v472, 4
        %v556 = vpop.permute.xlu0 %555
        %557 = vrot.lane.b32.xlu0 %v480, 4
        %v558 = vpop.permute.xlu0 %557
        %559 = vrot.lane.b32.xlu0 %v488, 4
        %v560 = vpop.permute.xlu0 %559
        %561 = vrot.lane.b32.xlu0 %v496, 4
        %v562 = vpop.permute.xlu0 %561
        %563 = vrot.lane.b32.xlu0 %v504, 4
        %v564 = vpop.permute.xlu0 %563
        %565 = vrot.lane.b32.xlu0 %v512, 4
        %v566 = vpop.permute.xlu0 %565
        %567 = vrot.lane.b32.xlu0 %v520, 4
        %v568 = vpop.permute.xlu0 %567
        %569 = vrot.lane.b32.xlu0 %v528, 4
        %v570 = vpop.permute.xlu0 %569
        %571 = vrot.lane.b32.xlu0 %v536, 4
        %v572 = vpop.permute.xlu0 %571
        %v574 = vunpack.c.l.b16 %v282
        %v575 = vpack.c.b16 %v332, %v574
        %vm576 = vcmask 1046528
        %v577 = vrot.slane %v575, 1
        %v578 = vrot.slane %v368, 1
        %v579 = vsel %vm576, %v577, %v578
        %v580 = vrot.slane %v369, 1
        %v581 = vsel %vm576, %v578, %v580
        %v582 = vrot.slane %v370, 1
        %v583 = vsel %vm576, %v580, %v582
        %v584 = vrot.slane %v371, 1
        %v585 = vsel %vm576, %v582, %v584
        %v586 = vrot.slane %v372, 1
        %v587 = vsel %vm576, %v584, %v586
        %v588 = vrot.slane %v373, 1
        %v589 = vsel %vm576, %v586, %v588
        %v590 = vrot.slane %v374, 1
        %v591 = vsel %vm576, %v588, %v590
        %v592 = vrot.slane %v375, 1
        %v593 = vsel %vm576, %v590, %v592
        %v594 = vrot.slane %v376, 1
        %v595 = vsel %vm576, %v592, %v594
        %v596 = vrot.slane %v377, 1
        %v597 = vsel %vm576, %v594, %v596
        %v598 = vrot.slane %v378, 1
        %v599 = vsel %vm576, %v596, %v598
        %v600 = vrot.slane %v379, 1
        %v601 = vsel %vm576, %v598, %v600
        %v602 = vrot.slane %v380, 1
        %v603 = vsel %vm576, %v600, %v602
        %v604 = vrot.slane %v381, 1
        %v605 = vsel %vm576, %v602, %v604
        %v606 = vrot.slane %v382, 1
        %v607 = vsel %vm576, %v604, %v606
        %v608 = vrot.slane %v383, 1
        %v609 = vsel %vm576, %v606, %v608
        %v610 = vrot.slane %v384, 1
        %v611 = vsel %vm576, %v608, %v610
        %v612 = vrot.slane %v387, 1
        %v613 = vsel %vm576, %v610, %v612
        %614 = vrot.lane.b32.xlu0 %v579, 8
        %v615 = vpop.permute.xlu0 %614
        %616 = vrot.lane.b32.xlu0 %v581, 8
        %v617 = vpop.permute.xlu0 %616
        %618 = vrot.lane.b32.xlu0 %v583, 8
        %v619 = vpop.permute.xlu0 %618
        %620 = vrot.lane.b32.xlu0 %v585, 8
        %v621 = vpop.permute.xlu0 %620
        %622 = vrot.lane.b32.xlu0 %v587, 8
        %v623 = vpop.permute.xlu0 %622
        %624 = vrot.lane.b32.xlu0 %v589, 8
        %v625 = vpop.permute.xlu0 %624
        %626 = vrot.lane.b32.xlu0 %v591, 8
        %v627 = vpop.permute.xlu0 %626
        %628 = vrot.lane.b32.xlu0 %v593, 8
        %v629 = vpop.permute.xlu0 %628
        %630 = vrot.lane.b32.xlu0 %v595, 8
        %v631 = vpop.permute.xlu0 %630
        %632 = vrot.lane.b32.xlu0 %v597, 8
        %v633 = vpop.permute.xlu0 %632
        %634 = vrot.lane.b32.xlu0 %v599, 8
        %v635 = vpop.permute.xlu0 %634
        %636 = vrot.lane.b32.xlu0 %v601, 8
        %v637 = vpop.permute.xlu0 %636
        %638 = vrot.lane.b32.xlu0 %v603, 8
        %v639 = vpop.permute.xlu0 %638
        %640 = vrot.lane.b32.xlu0 %v605, 8
        %v641 = vpop.permute.xlu0 %640
        %642 = vrot.lane.b32.xlu0 %v607, 8
        %v643 = vpop.permute.xlu0 %642
        %644 = vrot.lane.b32.xlu0 %v609, 8
        %v645 = vpop.permute.xlu0 %644
        %646 = vrot.lane.b32.xlu0 %v611, 8
        %v647 = vpop.permute.xlu0 %646
        %648 = vrot.lane.b32.xlu0 %v613, 8
        %v649 = vpop.permute.xlu0 %648
        %v654 = vunpack.c.l.b16 %v283
        %v655 = vunpack.c.l.b16 %v284
        %v656 = vunpack.c.l.b16 %v285
        %v657 = vunpack.c.l.b16 %v286
        %v658 = vpack.c.b16 %v334, %v654
        %v659 = vpack.c.b16 %v656, %v655
        %v660 = vpack.c.b16 %v657, %v657
        %v661 = vrot.slane %v658, 1
        %v662 = vsel %vm576, %v661, %v580
        %v663 = vrot.slane %v659, 1
        %v664 = vsel %vm576, %v610, %v663
        %v665 = vrot.slane %v660, 1
        %v666 = vsel %vm576, %v663, %v665
        %667 = vrot.lane.b32.xlu0 %v662, 12
        %v668 = vpop.permute.xlu0 %667
        %669 = vrot.lane.b32.xlu0 %v583, 12
        %v670 = vpop.permute.xlu0 %669
        %671 = vrot.lane.b32.xlu0 %v585, 12
        %v672 = vpop.permute.xlu0 %671
        %673 = vrot.lane.b32.xlu0 %v587, 12
        %v674 = vpop.permute.xlu0 %673
        %675 = vrot.lane.b32.xlu0 %v589, 12
        %v676 = vpop.permute.xlu0 %675
        %677 = vrot.lane.b32.xlu0 %v591, 12
        %v678 = vpop.permute.xlu0 %677
        %679 = vrot.lane.b32.xlu0 %v593, 12
        %v680 = vpop.permute.xlu0 %679
        %681 = vrot.lane.b32.xlu0 %v595, 12
        %v682 = vpop.permute.xlu0 %681
        %683 = vrot.lane.b32.xlu0 %v597, 12
        %v684 = vpop.permute.xlu0 %683
        %685 = vrot.lane.b32.xlu0 %v599, 12
        %v686 = vpop.permute.xlu0 %685
        %687 = vrot.lane.b32.xlu0 %v601, 12
        %v688 = vpop.permute.xlu0 %687
        %689 = vrot.lane.b32.xlu0 %v603, 12
        %v690 = vpop.permute.xlu0 %689
        %691 = vrot.lane.b32.xlu0 %v605, 12
        %v692 = vpop.permute.xlu0 %691
        %693 = vrot.lane.b32.xlu0 %v607, 12
        %v694 = vpop.permute.xlu0 %693
        %695 = vrot.lane.b32.xlu0 %v609, 12
        %v696 = vpop.permute.xlu0 %695
        %697 = vrot.lane.b32.xlu0 %v611, 12
        %v698 = vpop.permute.xlu0 %697
        %699 = vrot.lane.b32.xlu0 %v664, 12
        %v700 = vpop.permute.xlu0 %699
        %701 = vrot.lane.b32.xlu0 %v666, 12
        %v702 = vpop.permute.xlu0 %701
        %v704 = vunpack.c.l.b16 %v287
        %v705 = vpack.c.b16 %v704, %v704
        %vm706 = vsmask.f32 6400
        %v708 = vshrl.u32 %v658, 16
        %v710 = vrot.slane %v708, 1
        %v711 = vshll.u32 %v658, 16
        %v713 = vrot.slane %v711, 2
        %v714 = vor.u32 %v710, %v713
        %v715 = vrot.slane %v409, 1
        %v716 = vrot.slane %v405, 2
        %v717 = vor.u32 %v715, %v716
        %v718 = vsel %vm706, %v714, %v717
        %v719 = vrot.slane %v417, 1
        %v720 = vrot.slane %v413, 2
        %v721 = vor.u32 %v719, %v720
        %v722 = vsel %vm706, %v717, %v721
        %v723 = vrot.slane %v425, 1
        %v724 = vrot.slane %v421, 2
        %v725 = vor.u32 %v723, %v724
        %v726 = vsel %vm706, %v721, %v725
        %v727 = vrot.slane %v433, 1
        %v728 = vrot.slane %v429, 2
        %v729 = vor.u32 %v727, %v728
        %v730 = vsel %vm706, %v725, %v729
        %v731 = vrot.slane %v441, 1
        %v732 = vrot.slane %v437, 2
        %v733 = vor.u32 %v731, %v732
        %v734 = vsel %vm706, %v729, %v733
        %v735 = vrot.slane %v449, 1
        %v736 = vrot.slane %v445, 2
        %v737 = vor.u32 %v735, %v736
        %v738 = vsel %vm706, %v733, %v737
        %v739 = vrot.slane %v457, 1
        %v740 = vrot.slane %v453, 2
        %v741 = vor.u32 %v739, %v740
        %v742 = vsel %vm706, %v737, %v741
        %v743 = vrot.slane %v465, 1
        %v744 = vrot.slane %v461, 2
        %v745 = vor.u32 %v743, %v744
        %v746 = vsel %vm706, %v741, %v745
        %v747 = vrot.slane %v473, 1
        %v748 = vrot.slane %v469, 2
        %v749 = vor.u32 %v747, %v748
        %v750 = vsel %vm706, %v745, %v749
        %v751 = vrot.slane %v481, 1
        %v752 = vrot.slane %v477, 2
        %v753 = vor.u32 %v751, %v752
        %v754 = vsel %vm706, %v749, %v753
        %v755 = vrot.slane %v489, 1
        %v756 = vrot.slane %v485, 2
        %v757 = vor.u32 %v755, %v756
        %v758 = vsel %vm706, %v753, %v757
        %v759 = vrot.slane %v497, 1
        %v760 = vrot.slane %v493, 2
        %v761 = vor.u32 %v759, %v760
        %v762 = vsel %vm706, %v757, %v761
        %v763 = vrot.slane %v505, 1
        %v764 = vrot.slane %v501, 2
        %v765 = vor.u32 %v763, %v764
        %v766 = vsel %vm706, %v761, %v765
        %v767 = vrot.slane %v513, 1
        %v768 = vrot.slane %v509, 2
        %v769 = vor.u32 %v767, %v768
        %v770 = vsel %vm706, %v765, %v769
        %v771 = vrot.slane %v521, 1
        %v772 = vrot.slane %v517, 2
        %v773 = vor.u32 %v771, %v772
        %v774 = vsel %vm706, %v769, %v773
        %v775 = vrot.slane %v529, 1
        %v776 = vrot.slane %v525, 2
        %v777 = vor.u32 %v775, %v776
        %v778 = vsel %vm706, %v773, %v777
        %v780 = vshrl.u32 %v659, 16
        %v782 = vrot.slane %v780, 1
        %v783 = vshll.u32 %v659, 16
        %v785 = vrot.slane %v783, 2
        %v786 = vor.u32 %v782, %v785
        %v787 = vsel %vm706, %v777, %v786
        %v789 = vshrl.u32 %v705, 16
        %v791 = vrot.slane %v789, 1
        %v792 = vshll.u32 %v705, 16
        %v794 = vrot.slane %v792, 2
        %v795 = vor.u32 %v791, %v794
        %v796 = vsel %vm706, %v786, %v795
        %797 = vrot.lane.b32.xlu0 %v718, 16
        %v798 = vpop.permute.xlu0 %797
        %799 = vrot.lane.b32.xlu0 %v722, 16
        %v800 = vpop.permute.xlu0 %799
        %801 = vrot.lane.b32.xlu0 %v726, 16
        %v802 = vpop.permute.xlu0 %801
        %803 = vrot.lane.b32.xlu0 %v730, 16
        %v804 = vpop.permute.xlu0 %803
        %805 = vrot.lane.b32.xlu0 %v734, 16
        %v806 = vpop.permute.xlu0 %805
        %807 = vrot.lane.b32.xlu0 %v738, 16
        %v808 = vpop.permute.xlu0 %807
        %809 = vrot.lane.b32.xlu0 %v742, 16
        %v810 = vpop.permute.xlu0 %809
        %811 = vrot.lane.b32.xlu0 %v746, 16
        %v812 = vpop.permute.xlu0 %811
        %813 = vrot.lane.b32.xlu0 %v750, 16
        %v814 = vpop.permute.xlu0 %813
        %815 = vrot.lane.b32.xlu0 %v754, 16
        %v816 = vpop.permute.xlu0 %815
        %817 = vrot.lane.b32.xlu0 %v758, 16
        %v818 = vpop.permute.xlu0 %817
        %819 = vrot.lane.b32.xlu0 %v762, 16
        %v820 = vpop.permute.xlu0 %819
        %821 = vrot.lane.b32.xlu0 %v766, 16
        %v822 = vpop.permute.xlu0 %821
        %823 = vrot.lane.b32.xlu0 %v770, 16
        %v824 = vpop.permute.xlu0 %823
        %825 = vrot.lane.b32.xlu0 %v774, 16
        %v826 = vpop.permute.xlu0 %825
        %827 = vrot.lane.b32.xlu0 %v778, 16
        %v828 = vpop.permute.xlu0 %827
        %829 = vrot.lane.b32.xlu0 %v787, 16
        %v830 = vpop.permute.xlu0 %829
        %831 = vrot.lane.b32.xlu0 %v796, 16
        %v832 = vpop.permute.xlu0 %831
        %v834 = vunpack.c.l.b16 %v288
        %v835 = vpack.c.b16 %v334, %v834
        %vm836 = vcmask 1045504
        %v837 = vrot.slane %v835, 2
        %v838 = vrot.slane %v369, 2
        %v839 = vsel %vm836, %v837, %v838
        %v840 = vrot.slane %v370, 2
        %v841 = vsel %vm836, %v838, %v840
        %v842 = vrot.slane %v371, 2
        %v843 = vsel %vm836, %v840, %v842
        %v844 = vrot.slane %v372, 2
        %v845 = vsel %vm836, %v842, %v844
        %v846 = vrot.slane %v373, 2
        %v847 = vsel %vm836, %v844, %v846
        %v848 = vrot.slane %v374, 2
        %v849 = vsel %vm836, %v846, %v848
        %v850 = vrot.slane %v375, 2
        %v851 = vsel %vm836, %v848, %v850
        %v852 = vrot.slane %v376, 2
        %v853 = vsel %vm836, %v850, %v852
        %v854 = vrot.slane %v377, 2
        %v855 = vsel %vm836, %v852, %v854
        %v856 = vrot.slane %v378, 2
        %v857 = vsel %vm836, %v854, %v856
        %v858 = vrot.slane %v379, 2
        %v859 = vsel %vm836, %v856, %v858
        %v860 = vrot.slane %v380, 2
        %v861 = vsel %vm836, %v858, %v860
        %v862 = vrot.slane %v381, 2
        %v863 = vsel %vm836, %v860, %v862
        %v864 = vrot.slane %v382, 2
        %v865 = vsel %vm836, %v862, %v864
        %v866 = vrot.slane %v383, 2
        %v867 = vsel %vm836, %v864, %v866
        %v868 = vrot.slane %v384, 2
        %v869 = vsel %vm836, %v866, %v868
        %v870 = vrot.slane %v659, 2
        %v871 = vsel %vm836, %v868, %v870
        %v872 = vrot.slane %v705, 2
        %v873 = vsel %vm836, %v870, %v872
        %874 = vrot.lane.b32.xlu0 %v839, 20
        %v875 = vpop.permute.xlu0 %874
        %876 = vrot.lane.b32.xlu0 %v841, 20
        %v877 = vpop.permute.xlu0 %876
        %878 = vrot.lane.b32.xlu0 %v843, 20
        %v879 = vpop.permute.xlu0 %878
        %880 = vrot.lane.b32.xlu0 %v845, 20
        %v881 = vpop.permute.xlu0 %880
        %882 = vrot.lane.b32.xlu0 %v847, 20
        %v883 = vpop.permute.xlu0 %882
        %884 = vrot.lane.b32.xlu0 %v849, 20
        %v885 = vpop.permute.xlu0 %884
        %886 = vrot.lane.b32.xlu0 %v851, 20
        %v887 = vpop.permute.xlu0 %886
        %888 = vrot.lane.b32.xlu0 %v853, 20
        %v889 = vpop.permute.xlu0 %888
        %890 = vrot.lane.b32.xlu0 %v855, 20
        %v891 = vpop.permute.xlu0 %890
        %892 = vrot.lane.b32.xlu0 %v857, 20
        %v893 = vpop.permute.xlu0 %892
        %894 = vrot.lane.b32.xlu0 %v859, 20
        %v895 = vpop.permute.xlu0 %894
        %896 = vrot.lane.b32.xlu0 %v861, 20
        %v897 = vpop.permute.xlu0 %896
        %898 = vrot.lane.b32.xlu0 %v863, 20
        %v899 = vpop.permute.xlu0 %898
        %900 = vrot.lane.b32.xlu0 %v865, 20
        %v901 = vpop.permute.xlu0 %900
        %902 = vrot.lane.b32.xlu0 %v867, 20
        %v903 = vpop.permute.xlu0 %902
        %904 = vrot.lane.b32.xlu0 %v869, 20
        %v905 = vpop.permute.xlu0 %904
        %906 = vrot.lane.b32.xlu0 %v871, 20
        %v907 = vpop.permute.xlu0 %906
        %908 = vrot.lane.b32.xlu0 %v873, 20
        %v909 = vpop.permute.xlu0 %908
        %v914 = vunpack.c.l.b16 %v289
        %v915 = vunpack.c.l.b16 %v290
        %v916 = vunpack.c.l.b16 %v291
        %v917 = vunpack.c.l.b16 %v292
        %v918 = vpack.c.b16 %v336, %v914
        %v919 = vpack.c.b16 %v916, %v915
        %v920 = vpack.c.b16 %v917, %v917
        %v921 = vrot.slane %v918, 2
        %v922 = vsel %vm836, %v921, %v840
        %v923 = vrot.slane %v919, 2
        %v924 = vsel %vm836, %v870, %v923
        %v925 = vrot.slane %v920, 2
        %v926 = vsel %vm836, %v923, %v925
        %927 = vrot.lane.b32.xlu0 %v922, 24
        %v928 = vpop.permute.xlu0 %927
        %929 = vrot.lane.b32.xlu0 %v843, 24
        %v930 = vpop.permute.xlu0 %929
        %931 = vrot.lane.b32.xlu0 %v845, 24
        %v932 = vpop.permute.xlu0 %931
        %933 = vrot.lane.b32.xlu0 %v847, 24
        %v934 = vpop.permute.xlu0 %933
        %935 = vrot.lane.b32.xlu0 %v849, 24
        %v936 = vpop.permute.xlu0 %935
        %937 = vrot.lane.b32.xlu0 %v851, 24
        %v938 = vpop.permute.xlu0 %937
        %939 = vrot.lane.b32.xlu0 %v853, 24
        %v940 = vpop.permute.xlu0 %939
        %941 = vrot.lane.b32.xlu0 %v855, 24
        %v942 = vpop.permute.xlu0 %941
        %943 = vrot.lane.b32.xlu0 %v857, 24
        %v944 = vpop.permute.xlu0 %943
        %945 = vrot.lane.b32.xlu0 %v859, 24
        %v946 = vpop.permute.xlu0 %945
        %947 = vrot.lane.b32.xlu0 %v861, 24
        %v948 = vpop.permute.xlu0 %947
        %949 = vrot.lane.b32.xlu0 %v863, 24
        %v950 = vpop.permute.xlu0 %949
        %951 = vrot.lane.b32.xlu0 %v865, 24
        %v952 = vpop.permute.xlu0 %951
        %953 = vrot.lane.b32.xlu0 %v867, 24
        %v954 = vpop.permute.xlu0 %953
        %955 = vrot.lane.b32.xlu0 %v869, 24
        %v956 = vpop.permute.xlu0 %955
        %957 = vrot.lane.b32.xlu0 %v871, 24
        %v958 = vpop.permute.xlu0 %957
        %959 = vrot.lane.b32.xlu0 %v924, 24
        %v960 = vpop.permute.xlu0 %959
        %961 = vrot.lane.b32.xlu0 %v926, 24
        %v962 = vpop.permute.xlu0 %961
        %v964 = vunpack.c.l.b16 %v293
        %v965 = vpack.c.b16 %v964, %v964
        %vm966 = vsmask.f32 5376
        %v968 = vshrl.u32 %v918, 16
        %v970 = vrot.slane %v968, 2
        %v971 = vshll.u32 %v918, 16
        %v973 = vrot.slane %v971, 3
        %v974 = vor.u32 %v970, %v973
        %v975 = vrot.slane %v417, 2
        %v976 = vrot.slane %v413, 3
        %v977 = vor.u32 %v975, %v976
        %v978 = vsel %vm966, %v974, %v977
        %v979 = vrot.slane %v425, 2
        %v980 = vrot.slane %v421, 3
        %v981 = vor.u32 %v979, %v980
        %v982 = vsel %vm966, %v977, %v981
        %v983 = vrot.slane %v433, 2
        %v984 = vrot.slane %v429, 3
        %v985 = vor.u32 %v983, %v984
        %v986 = vsel %vm966, %v981, %v985
        %v987 = vrot.slane %v441, 2
        %v988 = vrot.slane %v437, 3
        %v989 = vor.u32 %v987, %v988
        %v990 = vsel %vm966, %v985, %v989
        %v991 = vrot.slane %v449, 2
        %v992 = vrot.slane %v445, 3
        %v993 = vor.u32 %v991, %v992
        %v994 = vsel %vm966, %v989, %v993
        %v995 = vrot.slane %v457, 2
        %v996 = vrot.slane %v453, 3
        %v997 = vor.u32 %v995, %v996
        %v998 = vsel %vm966, %v993, %v997
        %v999 = vrot.slane %v465, 2
        %v1000 = vrot.slane %v461, 3
        %v1001 = vor.u32 %v999, %v1000
        %v1002 = vsel %vm966, %v997, %v1001
        %v1003 = vrot.slane %v473, 2
        %v1004 = vrot.slane %v469, 3
        %v1005 = vor.u32 %v1003, %v1004
        %v1006 = vsel %vm966, %v1001, %v1005
        %v1007 = vrot.slane %v481, 2
        %v1008 = vrot.slane %v477, 3
        %v1009 = vor.u32 %v1007, %v1008
        %v1010 = vsel %vm966, %v1005, %v1009
        %v1011 = vrot.slane %v489, 2
        %v1012 = vrot.slane %v485, 3
        %v1013 = vor.u32 %v1011, %v1012
        %v1014 = vsel %vm966, %v1009, %v1013
        %v1015 = vrot.slane %v497, 2
        %v1016 = vrot.slane %v493, 3
        %v1017 = vor.u32 %v1015, %v1016
        %v1018 = vsel %vm966, %v1013, %v1017
        %v1019 = vrot.slane %v505, 2
        %v1020 = vrot.slane %v501, 3
        %v1021 = vor.u32 %v1019, %v1020
        %v1022 = vsel %vm966, %v1017, %v1021
        %v1023 = vrot.slane %v513, 2
        %v1024 = vrot.slane %v509, 3
        %v1025 = vor.u32 %v1023, %v1024
        %v1026 = vsel %vm966, %v1021, %v1025
        %v1027 = vrot.slane %v521, 2
        %v1028 = vrot.slane %v517, 3
        %v1029 = vor.u32 %v1027, %v1028
        %v1030 = vsel %vm966, %v1025, %v1029
        %v1031 = vrot.slane %v529, 2
        %v1032 = vrot.slane %v525, 3
        %v1033 = vor.u32 %v1031, %v1032
        %v1034 = vsel %vm966, %v1029, %v1033
        %v1035 = vrot.slane %v780, 2
        %v1036 = vrot.slane %v783, 3
        %v1037 = vor.u32 %v1035, %v1036
        %v1038 = vsel %vm966, %v1033, %v1037
        %v1040 = vshrl.u32 %v919, 16
        %v1042 = vrot.slane %v1040, 2
        %v1043 = vshll.u32 %v919, 16
        %v1045 = vrot.slane %v1043, 3
        %v1046 = vor.u32 %v1042, %v1045
        %v1047 = vsel %vm966, %v1037, %v1046
        %v1049 = vshrl.u32 %v965, 16
        %v1051 = vrot.slane %v1049, 2
        %v1052 = vshll.u32 %v965, 16
        %v1054 = vrot.slane %v1052, 3
        %v1055 = vor.u32 %v1051, %v1054
        %v1056 = vsel %vm966, %v1046, %v1055
        %1057 = vrot.lane.b32.xlu0 %v978, 28
        %v1058 = vpop.permute.xlu0 %1057
        %1059 = vrot.lane.b32.xlu0 %v982, 28
        %v1060 = vpop.permute.xlu0 %1059
        %1061 = vrot.lane.b32.xlu0 %v986, 28
        %v1062 = vpop.permute.xlu0 %1061
        %1063 = vrot.lane.b32.xlu0 %v990, 28
        %v1064 = vpop.permute.xlu0 %1063
        %1065 = vrot.lane.b32.xlu0 %v994, 28
        %v1066 = vpop.permute.xlu0 %1065
        %1067 = vrot.lane.b32.xlu0 %v998, 28
        %v1068 = vpop.permute.xlu0 %1067
        %1069 = vrot.lane.b32.xlu0 %v1002, 28
        %v1070 = vpop.permute.xlu0 %1069
        %1071 = vrot.lane.b32.xlu0 %v1006, 28
        %v1072 = vpop.permute.xlu0 %1071
        %1073 = vrot.lane.b32.xlu0 %v1010, 28
        %v1074 = vpop.permute.xlu0 %1073
        %1075 = vrot.lane.b32.xlu0 %v1014, 28
        %v1076 = vpop.permute.xlu0 %1075
        %1077 = vrot.lane.b32.xlu0 %v1018, 28
        %v1078 = vpop.permute.xlu0 %1077
        %1079 = vrot.lane.b32.xlu0 %v1022, 28
        %v1080 = vpop.permute.xlu0 %1079
        %1081 = vrot.lane.b32.xlu0 %v1026, 28
        %v1082 = vpop.permute.xlu0 %1081
        %1083 = vrot.lane.b32.xlu0 %v1030, 28
        %v1084 = vpop.permute.xlu0 %1083
        %1085 = vrot.lane.b32.xlu0 %v1034, 28
        %v1086 = vpop.permute.xlu0 %1085
        %1087 = vrot.lane.b32.xlu0 %v1038, 28
        %v1088 = vpop.permute.xlu0 %1087
        %1089 = vrot.lane.b32.xlu0 %v1047, 28
        %v1090 = vpop.permute.xlu0 %1089
        %1091 = vrot.lane.b32.xlu0 %v1056, 28
        %v1092 = vpop.permute.xlu0 %1091
        %v1094 = vunpack.c.l.b16 %v294
        %v1095 = vpack.c.b16 %v336, %v1094
        %vm1096 = vcmask 1044480
        %v1097 = vrot.slane %v1095, 3
        %v1098 = vrot.slane %v370, 3
        %v1099 = vsel %vm1096, %v1097, %v1098
        %v1100 = vrot.slane %v371, 3
        %v1101 = vsel %vm1096, %v1098, %v1100
        %v1102 = vrot.slane %v372, 3
        %v1103 = vsel %vm1096, %v1100, %v1102
        %v1104 = vrot.slane %v373, 3
        %v1105 = vsel %vm1096, %v1102, %v1104
        %v1106 = vrot.slane %v374, 3
        %v1107 = vsel %vm1096, %v1104, %v1106
        %v1108 = vrot.slane %v375, 3
        %v1109 = vsel %vm1096, %v1106, %v1108
        %v1110 = vrot.slane %v376, 3
        %v1111 = vsel %vm1096, %v1108, %v1110
        %v1112 = vrot.slane %v377, 3
        %v1113 = vsel %vm1096, %v1110, %v1112
        %v1114 = vrot.slane %v378, 3
        %v1115 = vsel %vm1096, %v1112, %v1114
        %v1116 = vrot.slane %v379, 3
        %v1117 = vsel %vm1096, %v1114, %v1116
        %v1118 = vrot.slane %v380, 3
        %v1119 = vsel %vm1096, %v1116, %v1118
        %v1120 = vrot.slane %v381, 3
        %v1121 = vsel %vm1096, %v1118, %v1120
        %v1122 = vrot.slane %v382, 3
        %v1123 = vsel %vm1096, %v1120, %v1122
        %v1124 = vrot.slane %v383, 3
        %v1125 = vsel %vm1096, %v1122, %v1124
        %v1126 = vrot.slane %v384, 3
        %v1127 = vsel %vm1096, %v1124, %v1126
        %v1128 = vrot.slane %v659, 3
        %v1129 = vsel %vm1096, %v1126, %v1128
        %v1130 = vrot.slane %v919, 3
        %v1131 = vsel %vm1096, %v1128, %v1130
        %v1132 = vrot.slane %v965, 3
        %v1133 = vsel %vm1096, %v1130, %v1132
        %1134 = vrot.lane.b32.xlu0 %v1099, 32
        %v1135 = vpop.permute.xlu0 %1134
        %1136 = vrot.lane.b32.xlu0 %v1101, 32
        %v1137 = vpop.permute.xlu0 %1136
        %1138 = vrot.lane.b32.xlu0 %v1103, 32
        %v1139 = vpop.permute.xlu0 %1138
        %1140 = vrot.lane.b32.xlu0 %v1105, 32
        %v1141 = vpop.permute.xlu0 %1140
        %1142 = vrot.lane.b32.xlu0 %v1107, 32
        %v1143 = vpop.permute.xlu0 %1142
        %1144 = vrot.lane.b32.xlu0 %v1109, 32
        %v1145 = vpop.permute.xlu0 %1144
        %1146 = vrot.lane.b32.xlu0 %v1111, 32
        %v1147 = vpop.permute.xlu0 %1146
        %1148 = vrot.lane.b32.xlu0 %v1113, 32
        %v1149 = vpop.permute.xlu0 %1148
        %1150 = vrot.lane.b32.xlu0 %v1115, 32
        %v1151 = vpop.permute.xlu0 %1150
        %1152 = vrot.lane.b32.xlu0 %v1117, 32
        %v1153 = vpop.permute.xlu0 %1152
        %1154 = vrot.lane.b32.xlu0 %v1119, 32
        %v1155 = vpop.permute.xlu0 %1154
        %1156 = vrot.lane.b32.xlu0 %v1121, 32
        %v1157 = vpop.permute.xlu0 %1156
        %1158 = vrot.lane.b32.xlu0 %v1123, 32
        %v1159 = vpop.permute.xlu0 %1158
        %1160 = vrot.lane.b32.xlu0 %v1125, 32
        %v1161 = vpop.permute.xlu0 %1160
        %1162 = vrot.lane.b32.xlu0 %v1127, 32
        %v1163 = vpop.permute.xlu0 %1162
        %1164 = vrot.lane.b32.xlu0 %v1129, 32
        %v1165 = vpop.permute.xlu0 %1164
        %1166 = vrot.lane.b32.xlu0 %v1131, 32
        %v1167 = vpop.permute.xlu0 %1166
        %1168 = vrot.lane.b32.xlu0 %v1133, 32
        %v1169 = vpop.permute.xlu0 %1168
        %vm1170 = vcmask 31744
        %v1172 = vsel %vm1170, %v367, %v538
        %v1174 = vsel %vm1170, %v368, %v540
        %v1176 = vsel %vm1170, %v369, %v542
        %v1178 = vsel %vm1170, %v370, %v544
        %v1180 = vsel %vm1170, %v371, %v546
        %v1182 = vsel %vm1170, %v372, %v548
        %v1184 = vsel %vm1170, %v373, %v550
        %v1186 = vsel %vm1170, %v374, %v552
        %v1188 = vsel %vm1170, %v375, %v554
        %v1190 = vsel %vm1170, %v376, %v556
        %v1192 = vsel %vm1170, %v377, %v558
        %v1194 = vsel %vm1170, %v378, %v560
        %v1196 = vsel %vm1170, %v379, %v562
        %v1198 = vsel %vm1170, %v380, %v564
        %v1200 = vsel %vm1170, %v381, %v566
        %v1202 = vsel %vm1170, %v382, %v568
        %v1204 = vsel %vm1170, %v383, %v570
        %v1206 = vsel %vm1170, %v384, %v572
        %vm1207 = vcmask 64512
        %v1209 = vsel %vm1207, %v1172, %v615
        %v1211 = vsel %vm1207, %v1174, %v617
        %v1213 = vsel %vm1207, %v1176, %v619
        %v1215 = vsel %vm1207, %v1178, %v621
        %v1217 = vsel %vm1207, %v1180, %v623
        %v1219 = vsel %vm1207, %v1182, %v625
        %v1221 = vsel %vm1207, %v1184, %v627
        %v1223 = vsel %vm1207, %v1186, %v629
        %v1225 = vsel %vm1207, %v1188, %v631
        %v1227 = vsel %vm1207, %v1190, %v633
        %v1229 = vsel %vm1207, %v1192, %v635
        %v1231 = vsel %vm1207, %v1194, %v637
        %v1233 = vsel %vm1207, %v1196, %v639
        %v1235 = vsel %vm1207, %v1198, %v641
        %v1237 = vsel %vm1207, %v1200, %v643
        %v1239 = vsel %vm1207, %v1202, %v645
        %v1241 = vsel %vm1207, %v1204, %v647
        %v1243 = vsel %vm1207, %v1206, %v649
        %vm1244 = vcmask 97280
        %v1246 = vsel %vm1244, %v1209, %v668
        %v1248 = vsel %vm1244, %v1211, %v670
        %v1250 = vsel %vm1244, %v1213, %v672
        %v1252 = vsel %vm1244, %v1215, %v674
        %v1254 = vsel %vm1244, %v1217, %v676
        %v1256 = vsel %vm1244, %v1219, %v678
        %v1258 = vsel %vm1244, %v1221, %v680
        %v1260 = vsel %vm1244, %v1223, %v682
        %v1262 = vsel %vm1244, %v1225, %v684
        %v1264 = vsel %vm1244, %v1227, %v686
        %v1266 = vsel %vm1244, %v1229, %v688
        %v1268 = vsel %vm1244, %v1231, %v690
        %v1270 = vsel %vm1244, %v1233, %v692
        %v1272 = vsel %vm1244, %v1235, %v694
        %v1274 = vsel %vm1244, %v1237, %v696
        %v1276 = vsel %vm1244, %v1239, %v698
        %v1278 = vsel %vm1244, %v1241, %v700
        %v1280 = vsel %vm1244, %v1243, %v702
        %vm1281 = vcmask 130048
        %v1283 = vsel %vm1281, %v1246, %v798
        %v1285 = vsel %vm1281, %v1248, %v800
        %v1287 = vsel %vm1281, %v1250, %v802
        %v1289 = vsel %vm1281, %v1252, %v804
        %v1291 = vsel %vm1281, %v1254, %v806
        %v1293 = vsel %vm1281, %v1256, %v808
        %v1295 = vsel %vm1281, %v1258, %v810
        %v1297 = vsel %vm1281, %v1260, %v812
        %v1299 = vsel %vm1281, %v1262, %v814
        %v1301 = vsel %vm1281, %v1264, %v816
        %v1303 = vsel %vm1281, %v1266, %v818
        %v1305 = vsel %vm1281, %v1268, %v820
        %v1307 = vsel %vm1281, %v1270, %v822
        %v1309 = vsel %vm1281, %v1272, %v824
        %v1311 = vsel %vm1281, %v1274, %v826
        %v1313 = vsel %vm1281, %v1276, %v828
        %v1315 = vsel %vm1281, %v1278, %v830
        %v1317 = vsel %vm1281, %v1280, %v832
        %vm1318 = vcmask 162816
        %v1320 = vsel %vm1318, %v1283, %v875
        %v1322 = vsel %vm1318, %v1285, %v877
        %v1324 = vsel %vm1318, %v1287, %v879
        %v1326 = vsel %vm1318, %v1289, %v881
        %v1328 = vsel %vm1318, %v1291, %v883
        %v1330 = vsel %vm1318, %v1293, %v885
        %v1332 = vsel %vm1318, %v1295, %v887
        %v1334 = vsel %vm1318, %v1297, %v889
        %v1336 = vsel %vm1318, %v1299, %v891
        %v1338 = vsel %vm1318, %v1301, %v893
        %v1340 = vsel %vm1318, %v1303, %v895
        %v1342 = vsel %vm1318, %v1305, %v897
        %v1344 = vsel %vm1318, %v1307, %v899
        %v1346 = vsel %vm1318, %v1309, %v901
        %v1348 = vsel %vm1318, %v1311, %v903
        %v1350 = vsel %vm1318, %v1313, %v905
        %v1352 = vsel %vm1318, %v1315, %v907
        %v1354 = vsel %vm1318, %v1317, %v909
        %vm1355 = vcmask 195584
        %v1357 = vsel %vm1355, %v1320, %v928
        %v1359 = vsel %vm1355, %v1322, %v930
        %v1361 = vsel %vm1355, %v1324, %v932
        %v1363 = vsel %vm1355, %v1326, %v934
        %v1365 = vsel %vm1355, %v1328, %v936
        %v1367 = vsel %vm1355, %v1330, %v938
        %v1369 = vsel %vm1355, %v1332, %v940
        %v1371 = vsel %vm1355, %v1334, %v942
        %v1373 = vsel %vm1355, %v1336, %v944
        %v1375 = vsel %vm1355, %v1338, %v946
        %v1377 = vsel %vm1355, %v1340, %v948
        %v1379 = vsel %vm1355, %v1342, %v950
        %v1381 = vsel %vm1355, %v1344, %v952
        %v1383 = vsel %vm1355, %v1346, %v954
        %v1385 = vsel %vm1355, %v1348, %v956
        %v1387 = vsel %vm1355, %v1350, %v958
        %v1389 = vsel %vm1355, %v1352, %v960
        %v1391 = vsel %vm1355, %v1354, %v962
        %vm1392 = vcmask 228352
        %v1394 = vsel %vm1392, %v1357, %v1058
        %v1396 = vsel %vm1392, %v1359, %v1060
        %v1398 = vsel %vm1392, %v1361, %v1062
        %v1400 = vsel %vm1392, %v1363, %v1064
        %v1402 = vsel %vm1392, %v1365, %v1066
        %v1404 = vsel %vm1392, %v1367, %v1068
        %v1406 = vsel %vm1392, %v1369, %v1070
        %v1408 = vsel %vm1392, %v1371, %v1072
        %v1410 = vsel %vm1392, %v1373, %v1074
        %v1412 = vsel %vm1392, %v1375, %v1076
        %v1414 = vsel %vm1392, %v1377, %v1078
        %v1416 = vsel %vm1392, %v1379, %v1080
        %v1418 = vsel %vm1392, %v1381, %v1082
        %v1420 = vsel %vm1392, %v1383, %v1084
        %v1422 = vsel %vm1392, %v1385, %v1086
        %v1424 = vsel %vm1392, %v1387, %v1088
        %v1426 = vsel %vm1392, %v1389, %v1090
        %v1428 = vsel %vm1392, %v1391, %v1092
        %vm1429 = vcmask 261120
        %v1431 = vsel %vm1429, %v1394, %v1135
        %v1433 = vsel %vm1429, %v1396, %v1137
        %v1435 = vsel %vm1429, %v1398, %v1139
        %v1437 = vsel %vm1429, %v1400, %v1141
        %v1439 = vsel %vm1429, %v1402, %v1143
        %v1441 = vsel %vm1429, %v1404, %v1145
        %v1443 = vsel %vm1429, %v1406, %v1147
        %v1445 = vsel %vm1429, %v1408, %v1149
        %v1447 = vsel %vm1429, %v1410, %v1151
        %v1449 = vsel %vm1429, %v1412, %v1153
        %v1451 = vsel %vm1429, %v1414, %v1155
        %v1453 = vsel %vm1429, %v1416, %v1157
        %v1455 = vsel %vm1429, %v1418, %v1159
        %v1457 = vsel %vm1429, %v1420, %v1161
        %v1459 = vsel %vm1429, %v1422, %v1163
        %v1461 = vsel %vm1429, %v1424, %v1165
        %v1463 = vsel %vm1429, %v1426, %v1167
        %v1465 = vsel %vm1429, %v1428, %v1169
        %v1466 = vld [vmem:[%s238] sm:$0xf]
        %v1467 = vld [vmem:[%s238 + $0x4] sm:$0xf]
        %v1468 = vld [vmem:[%s238 + $0x8] sm:$0xf]
        %v1469 = vld [vmem:[%s238 + $0xc] sm:$0xf]
        %v1470 = vld [vmem:[%s238 + $0x10] sm:$0x3]
        %v1476 = vunpack.c.l.b16 %v1466
        %v1477 = vunpack.c.l.b16 %v1467
        %v1478 = vunpack.c.l.b16 %v1468
        %v1479 = vunpack.c.l.b16 %v1469
        %v1480 = vunpack.c.l.b16 %v1470
        %v1481 = vpack.c.b16 %v1477, %v1476
        %v1482 = vpack.c.b16 %v1479, %v1478
        %v1483 = vpack.c.b16 %v1480, %v1480
        %vm1486 = vcmask 293888
        %v1487 = vsel %vm1486, %v1431, 0
        %v1489 = vsel %vm1486, %v1433, 0
        %v1491 = vsel %vm1486, %v1435, 0
        %v1493 = vsel %vm1486, %v1437, 0
        %v1495 = vsel %vm1486, %v1439, 0
        %v1497 = vsel %vm1486, %v1441, 0
        %v1499 = vsel %vm1486, %v1443, 0
        %v1501 = vsel %vm1486, %v1445, 0
        %v1503 = vsel %vm1486, %v1447, 0
        %v1505 = vsel %vm1486, %v1449, 0
        %v1507 = vsel %vm1486, %v1451, 0
        %v1509 = vsel %vm1486, %v1453, 0
        %v1511 = vsel %vm1486, %v1455, 0
        %v1513 = vsel %vm1486, %v1457, 0
        %v1515 = vsel %vm1486, %v1459, 0
        %v1517 = vsel %vm1486, %v1461, 0
        %v1519 = vsel %vm1486, %v1463, 0
        %v1521 = vsel %vm1486, %v1465, 0
        %vm1523 = vcmask 1041408
        %v1525 = vsel %vm1523, %v1483, 0
        %1527 = vmatprep.subr.bf16.mxu0 0
        %1528 = vmatpush1.bf16.msra.mxu0 0
        %1529 = vmatprep.subr.bf16.mxu0 0
        %1530 = vmatpush1.bf16.msra.mxu0 0
        %1531 = vmatprep.subr.bf16.mxu0 0
        %1532 = vmatpush1.bf16.msra.mxu0 0
        %1533 = vmatprep.subr.bf16.mxu0 0
        %1534 = vmatpush1.bf16.msra.mxu0 0
        %1535 = vmatprep.subr.bf16.mxu0 0
        %1536 = vmatpush1.bf16.msra.mxu0 0
        %1537 = vmatprep.subr.bf16.mxu0 0
        %1538 = vmatpush1.bf16.msra.mxu0 %v1525
        %1539 = vmatprep.subr.bf16.mxu0 0
        %1540 = vmatpush1.bf16.msra.mxu0 %v1482
        %1541 = vmatprep.subr.bf16.mxu0 0
        %1542 = vmatpush1.bf16.msra.mxu0 %v1481
        %1543 = vmatprep.subr.bf16.mxu0 0
        %1544 = vmatpush2.bf16.msra.mxu0 0
        %1545 = vmatprep.subr.bf16.mxu0 0
        %1546 = vmatpush2.bf16.msra.mxu0 0
        %1547 = vmatprep.subr.bf16.mxu0 0
        %1548 = vmatpush2.bf16.msra.mxu0 0
        %1549 = vmatprep.subr.bf16.mxu0 0
        %1550 = vmatpush2.bf16.msra.mxu0 0
        %1551 = vmatprep.subr.bf16.mxu0 0
        %1552 = vmatpush2.bf16.msra.mxu0 0
        %1553 = vmatprep.subr.bf16.mxu0 0
        %1554 = vmatpush2.bf16.msra.mxu0 0
        %1555 = vmatprep.subr.bf16.mxu0 0
        %1556 = vmatpush2.bf16.msra.mxu0 0
        %1557 = vmatprep.subr.bf16.mxu0 0
        %1558 = vmatpush2.bf16.msra.mxu0 0
        %1559 = vmatprep.mubr.bf16.mxu0 0
        %1560 = vmatmul.mubr.bf16.gmra.mxu0 %v1487
        %v1561 = vpop.f32.mrf.mxu0
        %v1562 = vadd.f32 0.0, %v1561
        %v1563 = vpop.f32.mrf.mxu0
        %v1564 = vpop.f32.mrf.mxu0
        %v1565 = vadd.f32 0.0, %v1564
        %v1566 = vpop.f32.mrf.mxu0
        %1567 = vmatprep.mubr.bf16.mxu0 0
        %1568 = vmatmul.mubr.bf16.gmra.mxu0 %v1489
        %v1569 = vpop.f32.mrf.mxu0
        %v1570 = vadd.f32 0.0, %v1569
        %v1571 = vpop.f32.mrf.mxu0
        %v1572 = vpop.f32.mrf.mxu0
        %v1573 = vadd.f32 0.0, %v1572
        %v1574 = vpop.f32.mrf.mxu0
        %1575 = vmatprep.mubr.bf16.mxu0 0
        %1576 = vmatmul.mubr.bf16.gmra.mxu0 %v1491
        %v1577 = vpop.f32.mrf.mxu0
        %v1578 = vadd.f32 0.0, %v1577
        %v1579 = vpop.f32.mrf.mxu0
        %v1580 = vpop.f32.mrf.mxu0
        %v1581 = vadd.f32 0.0, %v1580
        %v1582 = vpop.f32.mrf.mxu0
        %1583 = vmatprep.mubr.bf16.mxu0 0
        %1584 = vmatmul.mubr.bf16.gmra.mxu0 %v1493
        %v1585 = vpop.f32.mrf.mxu0
        %v1586 = vadd.f32 0.0, %v1585
        %v1587 = vpop.f32.mrf.mxu0
        %v1588 = vpop.f32.mrf.mxu0
        %v1589 = vadd.f32 0.0, %v1588
        %v1590 = vpop.f32.mrf.mxu0
        %1591 = vmatprep.mubr.bf16.mxu0 0
        %1592 = vmatmul.mubr.bf16.gmra.mxu0 %v1495
        %v1593 = vpop.f32.mrf.mxu0
        %v1594 = vadd.f32 0.0, %v1593
        %v1595 = vpop.f32.mrf.mxu0
        %v1596 = vpop.f32.mrf.mxu0
        %v1597 = vadd.f32 0.0, %v1596
        %v1598 = vpop.f32.mrf.mxu0
        %1599 = vmatprep.mubr.bf16.mxu0 0
        %1600 = vmatmul.mubr.bf16.gmra.mxu0 %v1497
        %v1601 = vpop.f32.mrf.mxu0
        %v1602 = vadd.f32 0.0, %v1601
        %v1603 = vpop.f32.mrf.mxu0
        %v1604 = vpop.f32.mrf.mxu0
        %v1605 = vadd.f32 0.0, %v1604
        %v1606 = vpop.f32.mrf.mxu0
        %1607 = vmatprep.mubr.bf16.mxu0 0
        %1608 = vmatmul.mubr.bf16.gmra.mxu0 %v1499
        %v1609 = vpop.f32.mrf.mxu0
        %v1610 = vadd.f32 0.0, %v1609
        %v1611 = vpop.f32.mrf.mxu0
        %v1612 = vpop.f32.mrf.mxu0
        %v1613 = vadd.f32 0.0, %v1612
        %v1614 = vpop.f32.mrf.mxu0
        %1615 = vmatprep.mubr.bf16.mxu0 0
        %1616 = vmatmul.mubr.bf16.gmra.mxu0 %v1501
        %v1617 = vpop.f32.mrf.mxu0
        %v1618 = vadd.f32 0.0, %v1617
        %v1619 = vpop.f32.mrf.mxu0
        %v1620 = vpop.f32.mrf.mxu0
        %v1621 = vadd.f32 0.0, %v1620
        %v1622 = vpop.f32.mrf.mxu0
        %1623 = vmatprep.mubr.bf16.mxu0 0
        %1624 = vmatmul.mubr.bf16.gmra.mxu0 %v1503
        %v1625 = vpop.f32.mrf.mxu0
        %v1626 = vadd.f32 0.0, %v1625
        %v1627 = vpop.f32.mrf.mxu0
        %v1628 = vpop.f32.mrf.mxu0
        %v1629 = vadd.f32 0.0, %v1628
        %v1630 = vpop.f32.mrf.mxu0
        %1631 = vmatprep.mubr.bf16.mxu0 0
        %1632 = vmatmul.mubr.bf16.gmra.mxu0 %v1505
        %v1633 = vpop.f32.mrf.mxu0
        %v1634 = vadd.f32 0.0, %v1633
        %v1635 = vpop.f32.mrf.mxu0
        %v1636 = vpop.f32.mrf.mxu0
        %v1637 = vadd.f32 0.0, %v1636
        %v1638 = vpop.f32.mrf.mxu0
        %1639 = vmatprep.mubr.bf16.mxu0 0
        %1640 = vmatmul.mubr.bf16.gmra.mxu0 %v1507
        %v1641 = vpop.f32.mrf.mxu0
        %v1642 = vadd.f32 0.0, %v1641
        %v1643 = vpop.f32.mrf.mxu0
        %v1644 = vpop.f32.mrf.mxu0
        %v1645 = vadd.f32 0.0, %v1644
        %v1646 = vpop.f32.mrf.mxu0
        %1647 = vmatprep.mubr.bf16.mxu0 0
        %1648 = vmatmul.mubr.bf16.gmra.mxu0 %v1509
        %v1649 = vpop.f32.mrf.mxu0
        %v1650 = vadd.f32 0.0, %v1649
        %v1651 = vpop.f32.mrf.mxu0
        %v1652 = vpop.f32.mrf.mxu0
        %v1653 = vadd.f32 0.0, %v1652
        %v1654 = vpop.f32.mrf.mxu0
        %1655 = vmatprep.mubr.bf16.mxu0 0
        %1656 = vmatmul.mubr.bf16.gmra.mxu0 %v1511
        %v1657 = vpop.f32.mrf.mxu0
        %v1658 = vadd.f32 0.0, %v1657
        %v1659 = vpop.f32.mrf.mxu0
        %v1660 = vpop.f32.mrf.mxu0
        %v1661 = vadd.f32 0.0, %v1660
        %v1662 = vpop.f32.mrf.mxu0
        %1663 = vmatprep.mubr.bf16.mxu0 0
        %1664 = vmatmul.mubr.bf16.gmra.mxu0 %v1513
        %v1665 = vpop.f32.mrf.mxu0
        %v1666 = vadd.f32 0.0, %v1665
        %v1667 = vpop.f32.mrf.mxu0
        %v1668 = vpop.f32.mrf.mxu0
        %v1669 = vadd.f32 0.0, %v1668
        %v1670 = vpop.f32.mrf.mxu0
        %1671 = vmatprep.mubr.bf16.mxu0 0
        %1672 = vmatmul.mubr.bf16.gmra.mxu0 %v1515
        %v1673 = vpop.f32.mrf.mxu0
        %v1674 = vadd.f32 0.0, %v1673
        %v1675 = vpop.f32.mrf.mxu0
        %v1676 = vpop.f32.mrf.mxu0
        %v1677 = vadd.f32 0.0, %v1676
        %v1678 = vpop.f32.mrf.mxu0
        %1679 = vmatprep.mubr.bf16.mxu0 0
        %1680 = vmatmul.mubr.bf16.gmra.mxu0 %v1517
        %v1681 = vpop.f32.mrf.mxu0
        %v1682 = vadd.f32 0.0, %v1681
        %v1683 = vpop.f32.mrf.mxu0
        %v1684 = vpop.f32.mrf.mxu0
        %v1685 = vadd.f32 0.0, %v1684
        %v1686 = vpop.f32.mrf.mxu0
        %1687 = vmatprep.mubr.bf16.mxu0 0
        %1688 = vmatmul.mubr.bf16.gmra.mxu0 %v1519
        %v1689 = vpop.f32.mrf.mxu0
        %v1690 = vadd.f32 0.0, %v1689
        %v1691 = vpop.f32.mrf.mxu0
        %v1692 = vpop.f32.mrf.mxu0
        %v1693 = vadd.f32 0.0, %v1692
        %v1694 = vpop.f32.mrf.mxu0
        %1695 = vmatprep.mubr.bf16.mxu0 0
        %1696 = vmatmul.mubr.bf16.gmra.mxu0 %v1521
        %v1697 = vpop.f32.mrf.mxu0
        %v1698 = vadd.f32 0.0, %v1697
        %v1699 = vpop.f32.mrf.mxu0
        %v1700 = vpop.f32.mrf.mxu0
        %v1701 = vadd.f32 0.0, %v1700
        %v1702 = vpop.f32.mrf.mxu0
        %1703 = vdwg.mxu0
        %v1704 = vld [vmem:[%s242] sm:$0x1]
        %v1705 = vlaneseq
        %v1706 = vshrl.u32 %v1705, 7
        %v1707 = vsub.s32 0, %v1706
        %v1708 = vrot.slane %v1704, %v1707
        %v1709 = vmul.f32 %v1562, %v1708
        %v1710 = vmul.f32 %v1565, %v1708
        %v1711 = vmul.f32 %v1570, %v1708
        %v1712 = vmul.f32 %v1573, %v1708
        %v1713 = vmul.f32 %v1578, %v1708
        %v1714 = vmul.f32 %v1581, %v1708
        %v1715 = vmul.f32 %v1586, %v1708
        %v1716 = vmul.f32 %v1589, %v1708
        %v1717 = vmul.f32 %v1594, %v1708
        %v1718 = vmul.f32 %v1597, %v1708
        %v1719 = vmul.f32 %v1602, %v1708
        %v1720 = vmul.f32 %v1605, %v1708
        %v1721 = vmul.f32 %v1610, %v1708
        %v1722 = vmul.f32 %v1613, %v1708
        %v1723 = vmul.f32 %v1618, %v1708
        %v1724 = vmul.f32 %v1621, %v1708
        %v1725 = vmul.f32 %v1626, %v1708
        %v1726 = vmul.f32 %v1629, %v1708
        %v1727 = vmul.f32 %v1634, %v1708
        %v1728 = vmul.f32 %v1637, %v1708
        %v1729 = vmul.f32 %v1642, %v1708
        %v1730 = vmul.f32 %v1645, %v1708
        %v1731 = vmul.f32 %v1650, %v1708
        %v1732 = vmul.f32 %v1653, %v1708
        %v1733 = vmul.f32 %v1658, %v1708
        %v1734 = vmul.f32 %v1661, %v1708
        %v1735 = vmul.f32 %v1666, %v1708
        %v1736 = vmul.f32 %v1669, %v1708
        %v1737 = vmul.f32 %v1674, %v1708
        %v1738 = vmul.f32 %v1677, %v1708
        %v1739 = vmul.f32 %v1682, %v1708
        %v1740 = vmul.f32 %v1685, %v1708
        %v1741 = vmul.f32 %v1690, %v1708
        %v1742 = vmul.f32 %v1693, %v1708
        %v1743 = vmul.f32 %v1698, %v1708
        %v1744 = vmul.f32 %v1701, %v1708
        %v1745 = vld [vmem:[%s242 + $0x1] sm:$0x1]
        %v1746 = vlaneseq
        %v1747 = vshrl.u32 %v1746, 7
        %v1748 = vsub.s32 0, %v1747
        %v1749 = vrot.slane %v1745, %v1748
        %v1750 = vadd.f32 %v1709, %v1749
        %v1751 = vadd.f32 %v1710, %v1749
        %v1752 = vadd.f32 %v1711, %v1749
        %v1753 = vadd.f32 %v1712, %v1749
        %v1754 = vadd.f32 %v1713, %v1749
        %v1755 = vadd.f32 %v1714, %v1749
        %v1756 = vadd.f32 %v1715, %v1749
        %v1757 = vadd.f32 %v1716, %v1749
        %v1758 = vadd.f32 %v1717, %v1749
        %v1759 = vadd.f32 %v1718, %v1749
        %v1760 = vadd.f32 %v1719, %v1749
        %v1761 = vadd.f32 %v1720, %v1749
        %v1762 = vadd.f32 %v1721, %v1749
        %v1763 = vadd.f32 %v1722, %v1749
        %v1764 = vadd.f32 %v1723, %v1749
        %v1765 = vadd.f32 %v1724, %v1749
        %v1766 = vadd.f32 %v1725, %v1749
        %v1767 = vadd.f32 %v1726, %v1749
        %v1768 = vadd.f32 %v1727, %v1749
        %v1769 = vadd.f32 %v1728, %v1749
        %v1770 = vadd.f32 %v1729, %v1749
        %v1771 = vadd.f32 %v1730, %v1749
        %v1772 = vadd.f32 %v1731, %v1749
        %v1773 = vadd.f32 %v1732, %v1749
        %v1774 = vadd.f32 %v1733, %v1749
        %v1775 = vadd.f32 %v1734, %v1749
        %v1776 = vadd.f32 %v1735, %v1749
        %v1777 = vadd.f32 %v1736, %v1749
        %v1778 = vadd.f32 %v1737, %v1749
        %v1779 = vadd.f32 %v1738, %v1749
        %v1780 = vadd.f32 %v1739, %v1749
        %v1781 = vadd.f32 %v1740, %v1749
        %v1782 = vadd.f32 %v1741, %v1749
        %v1783 = vadd.f32 %v1742, %v1749
        %v1784 = vadd.f32 %v1743, %v1749
        %v1785 = vadd.f32 %v1744, %v1749
        %v1786 = vmax.f32 %v1750, 0.0
        %v1787 = vmax.f32 %v1751, 0.0
        %v1788 = vmax.f32 %v1752, 0.0
        %v1789 = vmax.f32 %v1753, 0.0
        %v1790 = vmax.f32 %v1754, 0.0
        %v1791 = vmax.f32 %v1755, 0.0
        %v1792 = vmax.f32 %v1756, 0.0
        %v1793 = vmax.f32 %v1757, 0.0
        %v1794 = vmax.f32 %v1758, 0.0
        %v1795 = vmax.f32 %v1759, 0.0
        %v1796 = vmax.f32 %v1760, 0.0
        %v1797 = vmax.f32 %v1761, 0.0
        %v1798 = vmax.f32 %v1762, 0.0
        %v1799 = vmax.f32 %v1763, 0.0
        %v1800 = vmax.f32 %v1764, 0.0
        %v1801 = vmax.f32 %v1765, 0.0
        %v1802 = vmax.f32 %v1766, 0.0
        %v1803 = vmax.f32 %v1767, 0.0
        %v1804 = vmax.f32 %v1768, 0.0
        %v1805 = vmax.f32 %v1769, 0.0
        %v1806 = vmax.f32 %v1770, 0.0
        %v1807 = vmax.f32 %v1771, 0.0
        %v1808 = vmax.f32 %v1772, 0.0
        %v1809 = vmax.f32 %v1773, 0.0
        %v1810 = vmax.f32 %v1774, 0.0
        %v1811 = vmax.f32 %v1775, 0.0
        %v1812 = vmax.f32 %v1776, 0.0
        %v1813 = vmax.f32 %v1777, 0.0
        %v1814 = vmax.f32 %v1778, 0.0
        %v1815 = vmax.f32 %v1779, 0.0
        %v1816 = vmax.f32 %v1780, 0.0
        %v1817 = vmax.f32 %v1781, 0.0
        %v1818 = vmax.f32 %v1782, 0.0
        %v1819 = vmax.f32 %v1783, 0.0
        %v1820 = vmax.f32 %v1784, 0.0
        %v1821 = vmax.f32 %v1785, 0.0
        %v1822 = vpack.c.bf16 %v1787, %v1786
        %v1823 = vpack.c.bf16 %v1789, %v1788
        %v1824 = vpack.c.bf16 %v1791, %v1790
        %v1825 = vpack.c.bf16 %v1793, %v1792
        %v1826 = vpack.c.bf16 %v1795, %v1794
        %v1827 = vpack.c.bf16 %v1797, %v1796
        %v1828 = vpack.c.bf16 %v1799, %v1798
        %v1829 = vpack.c.bf16 %v1801, %v1800
        %v1830 = vpack.c.bf16 %v1803, %v1802
        %v1831 = vpack.c.bf16 %v1805, %v1804
        %v1832 = vpack.c.bf16 %v1807, %v1806
        %v1833 = vpack.c.bf16 %v1809, %v1808
        %v1834 = vpack.c.bf16 %v1811, %v1810
        %v1835 = vpack.c.bf16 %v1813, %v1812
        %v1836 = vpack.c.bf16 %v1815, %v1814
        %v1837 = vpack.c.bf16 %v1817, %v1816
        %v1838 = vpack.c.bf16 %v1819, %v1818
        %v1839 = vpack.c.bf16 %v1821, %v1820
        %v1858 = vunpack.c.l.b16 %v1822
        %v1859 = vunpack.c.h.b16 %v1822
        %v1860 = vunpack.c.l.b16 %v1823
        %v1861 = vunpack.c.h.b16 %v1823
        %v1862 = vunpack.c.l.b16 %v1824
        %v1863 = vunpack.c.h.b16 %v1824
        %v1864 = vunpack.c.l.b16 %v1825
        %v1865 = vunpack.c.h.b16 %v1825
        %v1866 = vunpack.c.l.b16 %v1826
        %v1867 = vunpack.c.h.b16 %v1826
        %v1868 = vunpack.c.l.b16 %v1827
        %v1869 = vunpack.c.h.b16 %v1827
        %v1870 = vunpack.c.l.b16 %v1828
        %v1871 = vunpack.c.h.b16 %v1828
        %v1872 = vunpack.c.l.b16 %v1829
        %v1873 = vunpack.c.h.b16 %v1829
        %v1874 = vunpack.c.l.b16 %v1830
        %v1875 = vunpack.c.h.b16 %v1830
        %v1876 = vunpack.c.l.b16 %v1831
        %v1877 = vunpack.c.h.b16 %v1831
        %v1878 = vunpack.c.l.b16 %v1832
        %v1879 = vunpack.c.h.b16 %v1832
        %v1880 = vunpack.c.l.b16 %v1833
        %v1881 = vunpack.c.h.b16 %v1833
        %v1882 = vunpack.c.l.b16 %v1834
        %v1883 = vunpack.c.h.b16 %v1834
        %v1884 = vunpack.c.l.b16 %v1835
        %v1885 = vunpack.c.h.b16 %v1835
        %v1886 = vunpack.c.l.b16 %v1836
        %v1887 = vunpack.c.h.b16 %v1836
        %v1888 = vunpack.c.l.b16 %v1837
        %v1889 = vunpack.c.h.b16 %v1837
        %v1890 = vunpack.c.l.b16 %v1838
        %v1891 = vunpack.c.h.b16 %v1838
        %v1892 = vunpack.c.l.b16 %v1839
        %v1893 = vunpack.c.h.b16 %v1839
        %v1894 = vpack.c.b16 %v1858, %v1858
        %v1895 = vpack.c.b16 %v1859, %v1859
        %v1896 = vpack.c.b16 %v1860, %v1860
        %v1897 = vpack.c.b16 %v1861, %v1861
        %v1898 = vpack.c.b16 %v1862, %v1862
        %v1899 = vpack.c.b16 %v1863, %v1863
        %v1900 = vpack.c.b16 %v1864, %v1864
        %v1901 = vpack.c.b16 %v1865, %v1865
        %v1902 = vpack.c.b16 %v1866, %v1866
        %v1903 = vpack.c.b16 %v1867, %v1867
        %v1904 = vpack.c.b16 %v1868, %v1868
        %v1905 = vpack.c.b16 %v1869, %v1869
        %v1906 = vpack.c.b16 %v1870, %v1870
        %v1907 = vpack.c.b16 %v1871, %v1871
        %v1908 = vpack.c.b16 %v1872, %v1872
        %v1909 = vpack.c.b16 %v1873, %v1873
        %v1910 = vpack.c.b16 %v1874, %v1874
        %v1911 = vpack.c.b16 %v1875, %v1875
        %v1912 = vpack.c.b16 %v1876, %v1876
        %v1913 = vpack.c.b16 %v1877, %v1877
        %v1914 = vpack.c.b16 %v1878, %v1878
        %v1915 = vpack.c.b16 %v1879, %v1879
        %v1916 = vpack.c.b16 %v1880, %v1880
        %v1917 = vpack.c.b16 %v1881, %v1881
        %v1918 = vpack.c.b16 %v1882, %v1882
        %v1919 = vpack.c.b16 %v1883, %v1883
        %v1920 = vpack.c.b16 %v1884, %v1884
        %v1921 = vpack.c.b16 %v1885, %v1885
        %v1922 = vpack.c.b16 %v1886, %v1886
        %v1923 = vpack.c.b16 %v1887, %v1887
        %v1924 = vpack.c.b16 %v1888, %v1888
        %v1925 = vpack.c.b16 %v1889, %v1889
        %v1926 = vpack.c.b16 %v1890, %v1890
        %v1927 = vpack.c.b16 %v1891, %v1891
        %v1928 = vpack.c.b16 %v1892, %v1892
        %v1929 = vpack.c.b16 %v1893, %v1893
        %1966 = vst [vmem:[%s224] sm:$0xf] %v1894
        %1967 = vst [vmem:[%s224 + $0x4] sm:$0xf] %v1895
        %1968 = vst [vmem:[%s224 + $0x8] sm:$0xf] %v1896
        %1969 = vst [vmem:[%s224 + $0xc] sm:$0xf] %v1897
        %1970 = vst [vmem:[%s224 + $0x10] sm:$0xf] %v1898
        %1971 = vst [vmem:[%s224 + $0x14] sm:$0xf] %v1899
        %1972 = vst [vmem:[%s224 + $0x18] sm:$0xf] %v1900
        %1973 = vst [vmem:[%s224 + $0x1c] sm:$0xf] %v1901
        %1974 = vst [vmem:[%s224 + $0x20] sm:$0xf] %v1902
        %1975 = vst [vmem:[%s224 + $0x24] sm:$0xf] %v1903
        %1976 = vst [vmem:[%s224 + $0x28] sm:$0xf] %v1904
        %1977 = vst [vmem:[%s224 + $0x2c] sm:$0xf] %v1905
        %1978 = vst [vmem:[%s224 + $0x30] sm:$0xf] %v1906
        %1979 = vst [vmem:[%s224 + $0x34] sm:$0xf] %v1907
        %1980 = vst [vmem:[%s224 + $0x38] sm:$0xf] %v1908
        %1981 = vst [vmem:[%s224 + $0x3c] sm:$0xf] %v1909
        %1982 = vst [vmem:[%s224 + $0x40] sm:$0xf] %v1910
        %1983 = vst [vmem:[%s224 + $0x44] sm:$0xf] %v1911
        %1984 = vst [vmem:[%s224 + $0x48] sm:$0xf] %v1912
        %1985 = vst [vmem:[%s224 + $0x4c] sm:$0xf] %v1913
        %1986 = vst [vmem:[%s224 + $0x50] sm:$0xf] %v1914
        %1987 = vst [vmem:[%s224 + $0x54] sm:$0xf] %v1915
        %1988 = vst [vmem:[%s224 + $0x58] sm:$0xf] %v1916
        %1989 = vst [vmem:[%s224 + $0x5c] sm:$0xf] %v1917
        %1990 = vst [vmem:[%s224 + $0x60] sm:$0xf] %v1918
        %1991 = vst [vmem:[%s224 + $0x64] sm:$0xf] %v1919
        %1992 = vst [vmem:[%s224 + $0x68] sm:$0xf] %v1920
        %1993 = vst [vmem:[%s224 + $0x6c] sm:$0xf] %v1921
        %1994 = vst [vmem:[%s224 + $0x70] sm:$0xf] %v1922
        %1995 = vst [vmem:[%s224 + $0x74] sm:$0xf] %v1923
        %1996 = vst [vmem:[%s224 + $0x78] sm:$0xf] %v1924
        %1997 = vst [vmem:[%s224 + $0x7c] sm:$0xf] %v1925
        %1998 = vst [vmem:[%s224 + $0x80] sm:$0xf] %v1926
        %1999 = vst [vmem:[%s224 + $0x84] sm:$0xf] %v1927
        %2000 = vst [vmem:[%s224 + $0x88] sm:$0xf] %v1928
        %2001 = vst [vmem:[%s224 + $0x8c] sm:$0xf] %v1929
        %s2002 = sand.u32 %s128, 1
        %s2003 = scalar_lea.sflag [#allocation3], %s2002
        %s2004 = sand.u32 %s128, 1
        %s2005 = smul.addr %s2004, 144
        %s2006 = scalar_lea.vmem [#allocation2], %s2005
        // Predicated region
        $region33: #{tpu_custom_call.1} parent=31 // pred_check
          %p2007 = pneg %p138
        $region34: #{tpu_custom_call.1} parent=31 // pred_check_branch
          %2009 = sbr.rel (%p2007) target = $region36
        $region35: #{tpu_custom_call.1} parent=31 // pred_region
          %s2010 = smul.u32 36, %s24
          %s2012 = ssub.s32 2304, 2304
          %2013 = vsyncadd %s2003, %s2012
          %s2014 = smul.addr %s22, 36
          %s2015 = sadd.s32 %s2010, %s2014
          %s2016 = smul.addr %s23, 36
          %s2017 = sadd.s32 %s2015, %s2016
          %s2018 = smul.addr %s2017, 64
          %s2019 = scalar_lea.hbm %s3, %s2018
          %s2020 = sshll.u32 %s2006, 4
          %s2021 = int_to_ptr.vmem [resolvable:$true] %s2020
          %2026 = dma.vmem_to_hbm [thread:$0]  %s2021, 2304, %s2019, %s2003, 64, 64, 4
        $region36: #{tpu_custom_call.1} parent=31 // pred_fallthru
          _
      $region32: #{tpu_custom_call.1} parent=5 // pred_fallthru
        _
      %p2027 = scmp.le.s32.totalorder 2, %s12
      // Predicated region
      $region37: #{tpu_custom_call.1} parent=5 // pred_check
        %p2028 = pneg %p2027
      $region38: #{tpu_custom_call.1} parent=5 // pred_check_branch
        %2030 = sbr.rel (%p2028) target = $region40
      $region39: #{tpu_custom_call.1} parent=5 // pred_region
        %s2031 = ssub.s32 %s12, 2
        // Predicated region
        $region41: #{tpu_custom_call.1} parent=39 // pred_check
          %p2032 = pneg %p144
        $region42: #{tpu_custom_call.1} parent=39 // pred_check_branch
          %2034 = sbr.rel (%p2032) target = $region44
        $region43: #{tpu_custom_call.1} parent=39 // pred_region
          %s2035 = sand.u32 %s129, 1
          %s2036 = scalar_lea.sflag [#allocation3], %s2035
          %s2037 = sand.u32 %s129, 1
          %s2038 = smul.addr %s2037, 144
          %s2039 = scalar_lea.vmem [#allocation2], %s2038
          %2040 = dma.done %s2036, 2304
        $region44: #{tpu_custom_call.1} parent=39 // pred_fallthru
          _
      $region40: #{tpu_custom_call.1} parent=5 // pred_fallthru
        _
    $region6: #{tpu_custom_call.1} parent=1 // loop_footer
      %s16 = sadd.s32 1, %s12
    $region7: #{tpu_custom_call.1} parent=1 // loop_footer_branch
      %11 = sbr.rel target = $region3
    $region8: #{tpu_custom_call.1} parent=1 // loop_exit
      _
    %2041 = vsyncpa [#allocation3], 1
    %s2042 = scalar_lea.sflag [#allocation3], 1
    %2043 = vsyncpa %s2042, 1

</llo_original>
